<compile_context>
chip_gen: v5e
topology: v5e:2x2
jax: 0.10.0
libtpu: 0.0.40
codegen_flags: <defaults>
</compile_context>

<pallas_src>
import functools

import jax
import jax.numpy as jnp
from jax.experimental import pallas as pl
from jax.experimental.pallas import tpu as pltpu

_C1, _C2, _C3 = 50, 10, 5
_CSUM = _C1 + _C2 + _C3      # 65 valid output channels
_CPAD = 128                  # lane-dense padded channel count


# ---------------------------------------------------------------------------
# Pallas kernel: whole 2-layer / 3-branch network for one image per grid step
# ---------------------------------------------------------------------------
def _prep_net_kernel(a1_ref, w1_ref, b1_ref, w2_ref, b2_ref, o_ref, hpad_ref,
                     *, H, W):
    # ---- layer 1: fused 3-branch conv == one (H*W, 27) @ (27, 128) matmul ----
    h1 = jnp.dot(a1_ref[...], w1_ref[...], preferred_element_type=jnp.float32)
    h1 = jnp.maximum(h1 + b1_ref[...], 0.0)          # (H*W, 128); cols >=65 stay 0

    # ---- stage layer-1 output into a zero-padded VMEM buffer (3x3 halo) ----
    hpad_ref[...] = jnp.zeros_like(hpad_ref)
    hpad_ref[pl.ds(1, H), pl.ds(1, W), :] = h1.reshape(H, W, _CPAD)

    # ---- layer 2: 9-tap accumulation with block-diagonal fused weights ----
    acc = jnp.zeros((H * W, _CPAD), jnp.float32)
    for t, (dh, dw) in enumerate((i, j) for i in range(3) for j in range(3)):
        patch = hpad_ref[pl.ds(dh, H), pl.ds(dw, W), :].reshape(H * W, _CPAD)
        acc = acc + jnp.dot(patch, w2_ref[t], preferred_element_type=jnp.float32)
    o_ref[...] = jnp.maximum(acc + b2_ref[...], 0.0)


# ---------------------------------------------------------------------------
# Parameter fusion: 6 convs -> (27,128) + (9,128,128) lane-dense weights
# ---------------------------------------------------------------------------
def _fuse_params(params):
    (w11, bb11), (w12, bb12) = params["b1c1"], params["b1c2"]
    (w21, bb21), (w22, bb22) = params["b2c1"], params["b2c2"]
    (w31, bb31), (w32, bb32) = params["b3c1"], params["b3c2"]

    # layer 1: branches share the same input -> concat along Cout, pad to 128.
    w1 = jnp.concatenate([w11, w21, w31], axis=-1)            # (3,3,3,65)
    w1 = w1.reshape(9 * w11.shape[2], _CSUM)                  # (27,65) tap-major
    w1 = jnp.pad(w1, ((0, 0), (0, _CPAD - _CSUM)))            # (27,128)
    b1 = jnp.pad(jnp.concatenate([bb11, bb21, bb31]),
                 (0, _CPAD - _CSUM)).reshape(1, _CPAD)

    # layer 2: block-diagonal over the fused 65-channel activation.
    w2 = jnp.zeros((3, 3, _CPAD, _CPAD), jnp.float32)
    w2 = w2.at[:, :, 0:_C1, 0:_C1].set(w12)
    w2 = w2.at[:, :, _C1:_C1 + _C2, _C1:_C1 + _C2].set(w22)
    w2 = w2.at[:, :, _C1 + _C2:_CSUM, _C1 + _C2:_CSUM].set(w32)
    w2 = w2.reshape(9, _CPAD, _CPAD)
    b2 = jnp.zeros((_CPAD,), jnp.float32)
    b2 = b2.at[0:_C1].set(bb12).at[_C1:_C1 + _C2].set(bb22)
    b2 = b2.at[_C1 + _C2:_CSUM].set(bb32)
    b2 = b2.reshape(1, _CPAD)
    return w1, b1, w2, b2


# ---------------------------------------------------------------------------
# PreparationNetwork forward (PyTorch-NCHW in / NCHW out)
# ---------------------------------------------------------------------------
def preparation_network(params, x_nchw):
    N, Cin, H, W = x_nchw.shape
    x = jnp.transpose(x_nchw, (0, 2, 3, 1))                   # NCHW -> NHWC

    # Tiny im2col of the 3-channel input (K = 27, ~55 KB at this size).
    # The much larger layer-2 im2col is done in-kernel from VMEM scratch.
    xp = jnp.pad(x, ((0, 0), (1, 1), (1, 1), (0, 0)))
    cols = [xp[:, dh:dh + H, dw:dw + W, :] for dh in range(3) for dw in range(3)]
    a1 = jnp.concatenate(cols, axis=-1).reshape(N * H * W, 9 * Cin)

    w1, b1, w2, b2 = _fuse_params(params)

    out = pl.pallas_call(
        functools.partial(_prep_net_kernel, H=H, W=W),
        out_shape=jax.ShapeDtypeStruct((N * H * W, _CPAD), jnp.float32),
        grid=(N,),
        in_specs=[
            pl.BlockSpec((H * W, 9 * Cin), lambda n: (n, 0)),
            pl.BlockSpec((9 * Cin, _CPAD), lambda n: (0, 0)),
            pl.BlockSpec((1, _CPAD), lambda n: (0, 0)),
            pl.BlockSpec((9, _CPAD, _CPAD), lambda n: (0, 0, 0)),
            pl.BlockSpec((1, _CPAD), lambda n: (0, 0)),
        ],
        out_specs=pl.BlockSpec((H * W, _CPAD), lambda n: (n, 0)),
        scratch_shapes=[pltpu.VMEM((H + 2, W + 2, _CPAD), jnp.float32)],
        compiler_params=pltpu.CompilerParams(
            dimension_semantics=("parallel",)),
    )(a1, w1, b1, w2, b2)

    out = out.reshape(N, H, W, _CPAD)[:, :, :, :_CSUM]        # drop lane padding
    return jnp.transpose(out, (0, 3, 1, 2))                   # NHWC -> NCHW


# ---------------------------------------------------------------------------
# PyTorch-style parameter init
# ---------------------------------------------------------------------------
_LAYER_SHAPES = {
    "b1c1": (3, 50), "b1c2": (50, 50),
    "b2c1": (3, 10), "b2c2": (10, 10),
    "b3c1": (3, 5),  "b3c2": (5, 5),
}


def init_params(key):
    params = {}
    for name, (cin, cout) in _LAYER_SHAPES.items():
        key, kw, kb = jax.random.split(key, 3)
        bound = 1.0 / jnp.sqrt(cin * 9.0)
        w = jax.random.uniform(kw, (3, 3, cin, cout), jnp.float32, -bound, bound)
        b = jax.random.uniform(kb, (cout,), jnp.float32, -bound, bound)
        params[name] = (w, b)
    return params


# ---------------------------------------------------------------------------
# Reference (pure JAX, full-precision convs) for validation
# ---------------------------------------------------------------------------
def _conv3x3_relu_ref(x_nhwc, w_hwio, b):
    y = jax.lax.conv_general_dilated(
        x_nhwc, w_hwio, window_strides=(1, 1), padding="SAME",
        dimension_numbers=("NHWC", "HWIO", "NHWC"),
        precision=jax.lax.Precision.HIGHEST)
    return jnp.maximum(y + b, 0.0)


def preparation_network_ref(params, x_nchw):
    x = jnp.transpose(x_nchw, (0, 2, 3, 1))
    b1 = _conv3x3_relu_ref(x, *params["b1c1"])
    b1 = _conv3x3_relu_ref(b1, *params["b1c2"])
    b2 = _conv3x3_relu_ref(x, *params["b2c1"])
    b2 = _conv3x3_relu_ref(b2, *params["b2c2"])
    b3 = _conv3x3_relu_ref(x, *params["b3c1"])
    b3 = _conv3x3_relu_ref(b3, *params["b3c2"])
    out = jnp.concatenate([b1, b2, b3], axis=-1)
    return jnp.transpose(out, (0, 3, 1, 2))


if __name__ == "__main__":
    key = jax.random.PRNGKey(0)
    key, kx = jax.random.split(key)
    x = jax.random.normal(kx, (2, 3, 16, 16), jnp.float32)   # NCHW like PyTorch

    params = init_params(key)

    out = jax.jit(preparation_network)(params, x)
    out = jax.block_until_ready(out)

    assert out.shape == (2, 65, 16, 16), out.shape
    assert bool(jnp.all(jnp.isfinite(out)))

    ref = preparation_network_ref(params, x)
    # Kernel uses default (bf16-pass, f32-accumulate) MXU precision.
    assert bool(jnp.allclose(out, ref, atol=1e-2, rtol=1e-2)), (
        float(jnp.max(jnp.abs(out - ref))))

    print("KERNEL_OK")
</pallas_src>

<mosaic_0001>
module attributes {stable_mosaic.version = 11 : i64} {
  func.func @_prep_net_kernel(%arg0: i32, %arg1: memref<256x27xf32, #tpu.memory_space<vmem>>, %arg2: memref<27x128xf32, #tpu.memory_space<vmem>>, %arg3: memref<1x128xf32, #tpu.memory_space<vmem>>, %arg4: memref<9x128x128xf32, #tpu.memory_space<vmem>>, %arg5: memref<1x128xf32, #tpu.memory_space<vmem>>, %arg6: memref<256x128xf32, #tpu.memory_space<vmem>>, %arg7: memref<18x18x128xf32, #tpu.memory_space<vmem>>) attributes {dimension_semantics = [#tpu.dimension_semantics<parallel>], iteration_bounds = array<i64: 2>, scalar_prefetch = 0 : i64, scratch_operands = 1 : i64, tpu.core_type = #tpu.core_type<tc>, window_params = [{transform_indices = @transform_0, window_bounds = array<i64: 256, 27>}, {pipeline_mode = #tpu.pipeline_mode<synchronous>, transform_indices = @transform_1, window_bounds = array<i64: 27, 128>}, {pipeline_mode = #tpu.pipeline_mode<synchronous>, transform_indices = @transform_2, window_bounds = array<i64: 1, 128>}, {pipeline_mode = #tpu.pipeline_mode<synchronous>, transform_indices = @transform_3, window_bounds = array<i64: 9, 128, 128>}, {pipeline_mode = #tpu.pipeline_mode<synchronous>, transform_indices = @transform_4, window_bounds = array<i64: 1, 128>}, {transform_indices = @transform_5, window_bounds = array<i64: 256, 128>}]} {
    %c0 = arith.constant 0 : index
    %c0_0 = arith.constant 0 : index
    %0 = vector.load %arg1[%c0, %c0_0] : memref<256x27xf32, #tpu.memory_space<vmem>>, vector<256x27xf32>
    %c0_1 = arith.constant 0 : index
    %c0_2 = arith.constant 0 : index
    %1 = vector.load %arg2[%c0_1, %c0_2] : memref<27x128xf32, #tpu.memory_space<vmem>>, vector<27x128xf32>
    %cst = arith.constant dense<0.000000e+00> : vector<256x128xf32>
    %2 = tpu.matmul %0, %1, %cst {dimension_numbers = #tpu.dot_dimension_numbers<[1], [0], [0], [1], [0, 0, 1, 1], [], []>} : vector<256x27xf32>, vector<27x128xf32>, vector<256x128xf32> -> vector<256x128xf32>
    %c0_3 = arith.constant 0 : index
    %c0_4 = arith.constant 0 : index
    %3 = vector.load %arg3[%c0_3, %c0_4] : memref<1x128xf32, #tpu.memory_space<vmem>>, vector<1x128xf32>
    %4 = vector.broadcast %3 : vector<1x128xf32> to vector<256x128xf32>
    %5 = arith.addf %2, %4 : vector<256x128xf32>
    %cst_5 = arith.constant 0.000000e+00 : f32
    %6 = vector.broadcast %cst_5 : f32 to vector<256x128xf32>
    %7 = arith.maximumf %5, %6 : vector<256x128xf32>
    %cst_6 = arith.constant 0.000000e+00 : f32
    %8 = vector.broadcast %cst_6 : f32 to vector<18x18x128xf32>
    %c0_7 = arith.constant 0 : index
    %c0_8 = arith.constant 0 : index
    %c0_9 = arith.constant 0 : index
    %9 = vector.load %arg7[%c0_7, %c0_8, %c0_9] : memref<18x18x128xf32, #tpu.memory_space<vmem>>, vector<18x18x128xf32>
    tpu.vector_store %arg7[%c0_7, %c0_8, %c0_9], %8 {strides = array<i32>} : memref<18x18x128xf32, #tpu.memory_space<vmem>>, vector<18x18x128xf32>,
    %10 = vector.shape_cast %7 : vector<256x128xf32> to vector<16x16x128xf32>
    %c1 = arith.constant 1 : index
    %c1_10 = arith.constant 1 : index
    %c0_11 = arith.constant 0 : index
    %11 = vector.load %arg7[%c1, %c1_10, %c0_11] : memref<18x18x128xf32, #tpu.memory_space<vmem>>, vector<16x16x128xf32>
    tpu.vector_store %arg7[%c1, %c1_10, %c0_11], %10 {strides = array<i32>} : memref<18x18x128xf32, #tpu.memory_space<vmem>>, vector<16x16x128xf32>,
    %cst_12 = arith.constant 0.000000e+00 : f32
    %12 = vector.broadcast %cst_12 : f32 to vector<256x128xf32>
    %c0_13 = arith.constant 0 : index
    %c0_14 = arith.constant 0 : index
    %c0_15 = arith.constant 0 : index
    %13 = vector.load %arg7[%c0_13, %c0_14, %c0_15] : memref<18x18x128xf32, #tpu.memory_space<vmem>>, vector<16x16x128xf32>
    %14 = vector.shape_cast %13 : vector<16x16x128xf32> to vector<256x128xf32>
    %c0_16 = arith.constant 0 : index
    %c0_17 = arith.constant 0 : index
    %c0_18 = arith.constant 0 : index
    %15 = vector.load %arg4[%c0_16, %c0_17, %c0_18] : memref<9x128x128xf32, #tpu.memory_space<vmem>>, vector<1x128x128xf32>
    %16 = vector.shape_cast %15 : vector<1x128x128xf32> to vector<128x128xf32>
    %cst_19 = arith.constant dense<0.000000e+00> : vector<256x128xf32>
    %17 = tpu.matmul %14, %16, %cst_19 {dimension_numbers = #tpu.dot_dimension_numbers<[1], [0], [0], [1], [0, 0, 1, 1], [], []>} : vector<256x128xf32>, vector<128x128xf32>, vector<256x128xf32> -> vector<256x128xf32>
    %18 = arith.addf %12, %17 : vector<256x128xf32>
    %c0_20 = arith.constant 0 : index
    %c1_21 = arith.constant 1 : index
    %c0_22 = arith.constant 0 : index
    %19 = vector.load %arg7[%c0_20, %c1_21, %c0_22] : memref<18x18x128xf32, #tpu.memory_space<vmem>>, vector<16x16x128xf32>
    %20 = vector.shape_cast %19 : vector<16x16x128xf32> to vector<256x128xf32>
    %c1_23 = arith.constant 1 : index
    %c0_24 = arith.constant 0 : index
    %c0_25 = arith.constant 0 : index
    %21 = vector.load %arg4[%c1_23, %c0_24, %c0_25] : memref<9x128x128xf32, #tpu.memory_space<vmem>>, vector<1x128x128xf32>
    %22 = vector.shape_cast %21 : vector<1x128x128xf32> to vector<128x128xf32>
    %cst_26 = arith.constant dense<0.000000e+00> : vector<256x128xf32>
    %23 = tpu.matmul %20, %22, %cst_26 {dimension_numbers = #tpu.dot_dimension_numbers<[1], [0], [0], [1], [0, 0, 1, 1], [], []>} : vector<256x128xf32>, vector<128x128xf32>, vector<256x128xf32> -> vector<256x128xf32>
    %24 = arith.addf %18, %23 : vector<256x128xf32>
    %c0_27 = arith.constant 0 : index
    %c2 = arith.constant 2 : index
    %c0_28 = arith.constant 0 : index
    %25 = vector.load %arg7[%c0_27, %c2, %c0_28] : memref<18x18x128xf32, #tpu.memory_space<vmem>>, vector<16x16x128xf32>
    %26 = vector.shape_cast %25 : vector<16x16x128xf32> to vector<256x128xf32>
    %c2_29 = arith.constant 2 : index
    %c0_30 = arith.constant 0 : index
    %c0_31 = arith.constant 0 : index
    %27 = vector.load %arg4[%c2_29, %c0_30, %c0_31] : memref<9x128x128xf32, #tpu.memory_space<vmem>>, vector<1x128x128xf32>
    %28 = vector.shape_cast %27 : vector<1x128x128xf32> to vector<128x128xf32>
    %cst_32 = arith.constant dense<0.000000e+00> : vector<256x128xf32>
    %29 = tpu.matmul %26, %28, %cst_32 {dimension_numbers = #tpu.dot_dimension_numbers<[1], [0], [0], [1], [0, 0, 1, 1], [], []>} : vector<256x128xf32>, vector<128x128xf32>, vector<256x128xf32> -> vector<256x128xf32>
    %30 = arith.addf %24, %29 : vector<256x128xf32>
    %c1_33 = arith.constant 1 : index
    %c0_34 = arith.constant 0 : index
    %c0_35 = arith.constant 0 : index
    %31 = vector.load %arg7[%c1_33, %c0_34, %c0_35] : memref<18x18x128xf32, #tpu.memory_space<vmem>>, vector<16x16x128xf32>
    %32 = vector.shape_cast %31 : vector<16x16x128xf32> to vector<256x128xf32>
    %c3 = arith.constant 3 : index
    %c0_36 = arith.constant 0 : index
    %c0_37 = arith.constant 0 : index
    %33 = vector.load %arg4[%c3, %c0_36, %c0_37] : memref<9x128x128xf32, #tpu.memory_space<vmem>>, vector<1x128x128xf32>
    %34 = vector.shape_cast %33 : vector<1x128x128xf32> to vector<128x128xf32>
    %cst_38 = arith.constant dense<0.000000e+00> : vector<256x128xf32>
    %35 = tpu.matmul %32, %34, %cst_38 {dimension_numbers = #tpu.dot_dimension_numbers<[1], [0], [0], [1], [0, 0, 1, 1], [], []>} : vector<256x128xf32>, vector<128x128xf32>, vector<256x128xf32> -> vector<256x128xf32>
    %36 = arith.addf %30, %35 : vector<256x128xf32>
    %c1_39 = arith.constant 1 : index
    %c1_40 = arith.constant 1 : index
    %c0_41 = arith.constant 0 : index
    %37 = vector.load %arg7[%c1_39, %c1_40, %c0_41] : memref<18x18x128xf32, #tpu.memory_space<vmem>>, vector<16x16x128xf32>
    %38 = vector.shape_cast %37 : vector<16x16x128xf32> to vector<256x128xf32>
    %c4 = arith.constant 4 : index
    %c0_42 = arith.constant 0 : index
    %c0_43 = arith.constant 0 : index
    %39 = vector.load %arg4[%c4, %c0_42, %c0_43] : memref<9x128x128xf32, #tpu.memory_space<vmem>>, vector<1x128x128xf32>
    %40 = vector.shape_cast %39 : vector<1x128x128xf32> to vector<128x128xf32>
    %cst_44 = arith.constant dense<0.000000e+00> : vector<256x128xf32>
    %41 = tpu.matmul %38, %40, %cst_44 {dimension_numbers = #tpu.dot_dimension_numbers<[1], [0], [0], [1], [0, 0, 1, 1], [], []>} : vector<256x128xf32>, vector<128x128xf32>, vector<256x128xf32> -> vector<256x128xf32>
    %42 = arith.addf %36, %41 : vector<256x128xf32>
    %c1_45 = arith.constant 1 : index
    %c2_46 = arith.constant 2 : index
    %c0_47 = arith.constant 0 : index
    %43 = vector.load %arg7[%c1_45, %c2_46, %c0_47] : memref<18x18x128xf32, #tpu.memory_space<vmem>>, vector<16x16x128xf32>
    %44 = vector.shape_cast %43 : vector<16x16x128xf32> to vector<256x128xf32>
    %c5 = arith.constant 5 : index
    %c0_48 = arith.constant 0 : index
    %c0_49 = arith.constant 0 : index
    %45 = vector.load %arg4[%c5, %c0_48, %c0_49] : memref<9x128x128xf32, #tpu.memory_space<vmem>>, vector<1x128x128xf32>
    %46 = vector.shape_cast %45 : vector<1x128x128xf32> to vector<128x128xf32>
    %cst_50 = arith.constant dense<0.000000e+00> : vector<256x128xf32>
    %47 = tpu.matmul %44, %46, %cst_50 {dimension_numbers = #tpu.dot_dimension_numbers<[1], [0], [0], [1], [0, 0, 1, 1], [], []>} : vector<256x128xf32>, vector<128x128xf32>, vector<256x128xf32> -> vector<256x128xf32>
    %48 = arith.addf %42, %47 : vector<256x128xf32>
    %c2_51 = arith.constant 2 : index
    %c0_52 = arith.constant 0 : index
    %c0_53 = arith.constant 0 : index
    %49 = vector.load %arg7[%c2_51, %c0_52, %c0_53] : memref<18x18x128xf32, #tpu.memory_space<vmem>>, vector<16x16x128xf32>
    %50 = vector.shape_cast %49 : vector<16x16x128xf32> to vector<256x128xf32>
    %c6 = arith.constant 6 : index
    %c0_54 = arith.constant 0 : index
    %c0_55 = arith.constant 0 : index
    %51 = vector.load %arg4[%c6, %c0_54, %c0_55] : memref<9x128x128xf32, #tpu.memory_space<vmem>>, vector<1x128x128xf32>
    %52 = vector.shape_cast %51 : vector<1x128x128xf32> to vector<128x128xf32>
    %cst_56 = arith.constant dense<0.000000e+00> : vector<256x128xf32>
    %53 = tpu.matmul %50, %52, %cst_56 {dimension_numbers = #tpu.dot_dimension_numbers<[1], [0], [0], [1], [0, 0, 1, 1], [], []>} : vector<256x128xf32>, vector<128x128xf32>, vector<256x128xf32> -> vector<256x128xf32>
    %54 = arith.addf %48, %53 : vector<256x128xf32>
    %c2_57 = arith.constant 2 : index
    %c1_58 = arith.constant 1 : index
    %c0_59 = arith.constant 0 : index
    %55 = vector.load %arg7[%c2_57, %c1_58, %c0_59] : memref<18x18x128xf32, #tpu.memory_space<vmem>>, vector<16x16x128xf32>
    %56 = vector.shape_cast %55 : vector<16x16x128xf32> to vector<256x128xf32>
    %c7 = arith.constant 7 : index
    %c0_60 = arith.constant 0 : index
    %c0_61 = arith.constant 0 : index
    %57 = vector.load %arg4[%c7, %c0_60, %c0_61] : memref<9x128x128xf32, #tpu.memory_space<vmem>>, vector<1x128x128xf32>
    %58 = vector.shape_cast %57 : vector<1x128x128xf32> to vector<128x128xf32>
    %cst_62 = arith.constant dense<0.000000e+00> : vector<256x128xf32>
    %59 = tpu.matmul %56, %58, %cst_62 {dimension_numbers = #tpu.dot_dimension_numbers<[1], [0], [0], [1], [0, 0, 1, 1], [], []>} : vector<256x128xf32>, vector<128x128xf32>, vector<256x128xf32> -> vector<256x128xf32>
    %60 = arith.addf %54, %59 : vector<256x128xf32>
    %c2_63 = arith.constant 2 : index
    %c2_64 = arith.constant 2 : index
    %c0_65 = arith.constant 0 : index
    %61 = vector.load %arg7[%c2_63, %c2_64, %c0_65] : memref<18x18x128xf32, #tpu.memory_space<vmem>>, vector<16x16x128xf32>
    %62 = vector.shape_cast %61 : vector<16x16x128xf32> to vector<256x128xf32>
    %c8 = arith.constant 8 : index
    %c0_66 = arith.constant 0 : index
    %c0_67 = arith.constant 0 : index
    %63 = vector.load %arg4[%c8, %c0_66, %c0_67] : memref<9x128x128xf32, #tpu.memory_space<vmem>>, vector<1x128x128xf32>
    %64 = vector.shape_cast %63 : vector<1x128x128xf32> to vector<128x128xf32>
    %cst_68 = arith.constant dense<0.000000e+00> : vector<256x128xf32>
    %65 = tpu.matmul %62, %64, %cst_68 {dimension_numbers = #tpu.dot_dimension_numbers<[1], [0], [0], [1], [0, 0, 1, 1], [], []>} : vector<256x128xf32>, vector<128x128xf32>, vector<256x128xf32> -> vector<256x128xf32>
    %66 = arith.addf %60, %65 : vector<256x128xf32>
    %c0_69 = arith.constant 0 : index
    %c0_70 = arith.constant 0 : index
    %67 = vector.load %arg5[%c0_69, %c0_70] : memref<1x128xf32, #tpu.memory_space<vmem>>, vector<1x128xf32>
    %68 = vector.broadcast %67 : vector<1x128xf32> to vector<256x128xf32>
    %69 = arith.addf %66, %68 : vector<256x128xf32>
    %cst_71 = arith.constant 0.000000e+00 : f32
    %70 = vector.broadcast %cst_71 : f32 to vector<256x128xf32>
    %71 = arith.maximumf %69, %70 : vector<256x128xf32>
    %c0_72 = arith.constant 0 : index
    %c0_73 = arith.constant 0 : index
    %72 = vector.load %arg6[%c0_72, %c0_73] : memref<256x128xf32, #tpu.memory_space<vmem>>, vector<256x128xf32>
    tpu.vector_store %arg6[%c0_72, %c0_73], %71 {strides = array<i32>} : memref<256x128xf32, #tpu.memory_space<vmem>>, vector<256x128xf32>,
    return
  }
  func.func @transform_0(%arg0: i32) -> (i32, i32) {
    %c0_i32 = arith.constant 0 : i32
    %c0_i32_0 = arith.constant 0 : i32
    return %arg0, %c0_i32 : i32, i32
  }
  func.func @transform_1(%arg0: i32) -> (i32, i32) {
    %c0_i32 = arith.constant 0 : i32
    %c0_i32_0 = arith.constant 0 : i32
    %c0_i32_1 = arith.constant 0 : i32
    return %c0_i32, %c0_i32_0 : i32, i32
  }
  func.func @transform_2(%arg0: i32) -> (i32, i32) {
    %c0_i32 = arith.constant 0 : i32
    %c0_i32_0 = arith.constant 0 : i32
    %c0_i32_1 = arith.constant 0 : i32
    return %c0_i32, %c0_i32_0 : i32, i32
  }
  func.func @transform_3(%arg0: i32) -> (i32, i32, i32) {
    %c0_i32 = arith.constant 0 : i32
    %c0_i32_0 = arith.constant 0 : i32
    %c0_i32_1 = arith.constant 0 : i32
    %c0_i32_2 = arith.constant 0 : i32
    return %c0_i32, %c0_i32_0, %c0_i32_1 : i32, i32, i32
  }
  func.func @transform_4(%arg0: i32) -> (i32, i32) {
    %c0_i32 = arith.constant 0 : i32
    %c0_i32_0 = arith.constant 0 : i32
    %c0_i32_1 = arith.constant 0 : i32
    return %c0_i32, %c0_i32_0 : i32, i32
  }
  func.func @transform_5(%arg0: i32) -> (i32, i32) {
    %c0_i32 = arith.constant 0 : i32
    %c0_i32_0 = arith.constant 0 : i32
    return %arg0, %c0_i32 : i32, i32
  }
}

</mosaic_0001>

<llo_original>
// kernel: preparation_network.1
$region0: #{preparation_network.1}
  #allocation0 [shape = 'u32[]', space=smem, size = 0x4, offset = 0x4, fixed_abs, tag = 'smem constant byte address 0x4 - core index']
  #allocation1 [shape = 'u32[72,128]{1,0:T(1,128)}', space=vmem, size = 0x9000, scoped, tag = 'internal scratch']
  #allocation2 [shape = 'f32[18,18,128]{2,1,0:T(8,128)}', space=vmem, size = 0x36000, scoped, tag = 'scratch operand']
  %s0 = inlined_call_operand.vmem [shape: f32[512,27], index: 0, kind: input, shape index: {}]
  %s1 = inlined_call_operand.vmem [shape: f32[27,128], index: 1, kind: input, shape index: {}]
  %s2 = inlined_call_operand.vmem [shape: f32[1,128], index: 2, kind: input, shape index: {}]
  %s3 = inlined_call_operand.vmem [shape: f32[9,128,128], index: 3, kind: input, shape index: {}]
  %s4 = inlined_call_operand.vmem [shape: f32[1,128], index: 4, kind: input, shape index: {}]
  %s5 = inlined_call_operand.vmem [shape: f32[512,128], index: 5, kind: output, shape index: {}]
  %s6 = sld [smem:[#allocation0]]
  $region53: #{preparation_network.1} parent=0
    _
  %s8 = ssub.s32 1, %s6
  %s9 = scalar_select 0, %s8, %s6
  loop: start=0, step=1, limit=4
  $region2: #{preparation_network.1} parent=0 // loop_pre_header
    _
  $region3: #{preparation_network.1} parent=0 // loop_header
    %s11 = sphi 0, %s15
    %p12 = scmp.ge.s32.totalorder %s11, 4
    %s21 = sphi 0, %s23
    %s24 = sphi 0, %s21
    %s25 = sphi 0, %s24
    %s41 = sphi 0, %s25
    %s45 = sphi 0, %s45
    %s47 = sphi 0, %s45
    %s48 = sphi 0, %s47
    %s62 = sphi 0, %s48
    %s66 = sphi 0, %s66
    %s68 = sphi 0, %s66
    %s69 = sphi 0, %s68
    %s83 = sphi 0, %s69
    %s87 = sphi 0, %s87
    %s89 = sphi 0, %s87
    %s90 = sphi 0, %s89
    %s104 = sphi 0, %s90
    %s108 = sphi 0, %s108
    %s110 = sphi 0, %s108
    %s111 = sphi 0, %s110
    %s125 = sphi 0, %s111
    %s131 = sphi 0, %s133
    %s134 = sphi 0, %s131
    %s135 = sphi 0, %s134
    %s151 = sphi 0, %s135
  $region4: #{preparation_network.1} parent=0 // loop_header_branch
    %14 = sbr.rel (%p12) target = $region8
  $region5: #{preparation_network.1} parent=0 // loop_body
    %s16 = ssub.s32 %s11, 1
    %s17 = ssub.s32 %s11, 2
    %s18 = sadd.s32 %s11, 1
    %s19 = ssub.s32 %s11, %s18
    %p20 = scmp.eq.s32.totalorder %s19, 0
    %s22 = sadd.s32 %s21, 1
    %s23 = scalar_select %p20, %s21, %s22
    %p26 = pneg %p20
    %p27 = scmp.eq.s32.totalorder %s11, 1
    %p28 = por %p26, %p27
    %p29 = scmp.ne.s32.totalorder %s21, %s24
    %p30 = scmp.eq.s32.totalorder %s11, 0
    %p31 = por %p29, %p30
    %p32 = scmp.ne.s32.totalorder %s21, %s24
    %p33 = scmp.eq.s32.totalorder %s16, 1
    %p34 = por %p32, %p33
    %p35 = scmp.ne.s32.totalorder %s24, %s25
    %p36 = scmp.eq.s32.totalorder %s16, 0
    %p37 = por %p35, %p36
    %p38 = scmp.ne.s32.totalorder %s24, %s25
    %p39 = scmp.eq.s32.totalorder %s17, 1
    %p40 = por %p38, %p39
    %p42 = scmp.ne.s32.totalorder %s25, %s41
    %p43 = scmp.eq.s32.totalorder %s17, 0
    %p44 = por %p42, %p43
    %s46 = sadd.s32 %s45, 1
    %p49 = scmp.eq.s32.totalorder %s11, 1
    %p50 = scmp.ne.s32.totalorder %s45, %s47
    %p51 = scmp.eq.s32.totalorder %s11, 0
    %p52 = por %p50, %p51
    %p53 = scmp.ne.s32.totalorder %s45, %s47
    %p54 = scmp.eq.s32.totalorder %s16, 1
    %p55 = por %p53, %p54
    %p56 = scmp.ne.s32.totalorder %s47, %s48
    %p57 = scmp.eq.s32.totalorder %s16, 0
    %p58 = por %p56, %p57
    %p59 = scmp.ne.s32.totalorder %s47, %s48
    %p60 = scmp.eq.s32.totalorder %s17, 1
    %p61 = por %p59, %p60
    %p63 = scmp.ne.s32.totalorder %s48, %s62
    %p64 = scmp.eq.s32.totalorder %s17, 0
    %p65 = por %p63, %p64
    %s67 = sadd.s32 %s66, 1
    %p70 = scmp.eq.s32.totalorder %s11, 1
    %p71 = scmp.ne.s32.totalorder %s66, %s68
    %p72 = scmp.eq.s32.totalorder %s11, 0
    %p73 = por %p71, %p72
    %p74 = scmp.ne.s32.totalorder %s66, %s68
    %p75 = scmp.eq.s32.totalorder %s16, 1
    %p76 = por %p74, %p75
    %p77 = scmp.ne.s32.totalorder %s68, %s69
    %p78 = scmp.eq.s32.totalorder %s16, 0
    %p79 = por %p77, %p78
    %p80 = scmp.ne.s32.totalorder %s68, %s69
    %p81 = scmp.eq.s32.totalorder %s17, 1
    %p82 = por %p80, %p81
    %p84 = scmp.ne.s32.totalorder %s69, %s83
    %p85 = scmp.eq.s32.totalorder %s17, 0
    %p86 = por %p84, %p85
    %s88 = sadd.s32 %s87, 1
    %p91 = scmp.eq.s32.totalorder %s11, 1
    %p92 = scmp.ne.s32.totalorder %s87, %s89
    %p93 = scmp.eq.s32.totalorder %s11, 0
    %p94 = por %p92, %p93
    %p95 = scmp.ne.s32.totalorder %s87, %s89
    %p96 = scmp.eq.s32.totalorder %s16, 1
    %p97 = por %p95, %p96
    %p98 = scmp.ne.s32.totalorder %s89, %s90
    %p99 = scmp.eq.s32.totalorder %s16, 0
    %p100 = por %p98, %p99
    %p101 = scmp.ne.s32.totalorder %s89, %s90
    %p102 = scmp.eq.s32.totalorder %s17, 1
    %p103 = por %p101, %p102
    %p105 = scmp.ne.s32.totalorder %s90, %s104
    %p106 = scmp.eq.s32.totalorder %s17, 0
    %p107 = por %p105, %p106
    %s109 = sadd.s32 %s108, 1
    %p112 = scmp.eq.s32.totalorder %s11, 1
    %p113 = scmp.ne.s32.totalorder %s108, %s110
    %p114 = scmp.eq.s32.totalorder %s11, 0
    %p115 = por %p113, %p114
    %p116 = scmp.ne.s32.totalorder %s108, %s110
    %p117 = scmp.eq.s32.totalorder %s16, 1
    %p118 = por %p116, %p117
    %p119 = scmp.ne.s32.totalorder %s110, %s111
    %p120 = scmp.eq.s32.totalorder %s16, 0
    %p121 = por %p119, %p120
    %p122 = scmp.ne.s32.totalorder %s110, %s111
    %p123 = scmp.eq.s32.totalorder %s17, 1
    %p124 = por %p122, %p123
    %p126 = scmp.ne.s32.totalorder %s111, %s125
    %p127 = scmp.eq.s32.totalorder %s17, 0
    %p128 = por %p126, %p127
    %s129 = ssub.s32 %s11, %s18
    %p130 = scmp.eq.s32.totalorder %s129, 0
    %s132 = sadd.s32 %s131, 1
    %s133 = scalar_select %p130, %s131, %s132
    %p136 = pneg %p130
    %p137 = scmp.eq.s32.totalorder %s11, 1
    %p138 = por %p136, %p137
    %p139 = scmp.ne.s32.totalorder %s131, %s134
    %p140 = scmp.eq.s32.totalorder %s11, 0
    %p141 = por %p139, %p140
    %p142 = scmp.ne.s32.totalorder %s131, %s134
    %p143 = scmp.eq.s32.totalorder %s16, 1
    %p144 = por %p142, %p143
    %p145 = scmp.ne.s32.totalorder %s134, %s135
    %p146 = scmp.eq.s32.totalorder %s16, 0
    %p147 = por %p145, %p146
    %p148 = scmp.ne.s32.totalorder %s134, %s135
    %p149 = scmp.eq.s32.totalorder %s17, 1
    %p150 = por %p148, %p149
    %p152 = scmp.ne.s32.totalorder %s135, %s151
    %p153 = scmp.eq.s32.totalorder %s17, 0
    %p154 = por %p152, %p153
    %p155 = scmp.le.s32.totalorder 1, %s11
    %p156 = scmp.lt.s32.totalorder %s11, 3
    %p157 = pnand %p155, %p156
    %p158 = pneg %p157
    // Predicated region
    $region9: #{preparation_network.1} parent=5 // pred_check
      _
    $region10: #{preparation_network.1} parent=5 // pred_check_branch
      %160 = sbr.rel (%p157) target = $region12
    $region11: #{preparation_network.1} parent=5 // pred_region
      %s161 = ssub.s32 %s11, 1
      // Predicated region
      $region13: #{preparation_network.1} parent=11 // pred_check
        %p162 = pneg %p58
      $region14: #{preparation_network.1} parent=11 // pred_check_branch
        %164 = sbr.rel (%p162) target = $region16
      $region15: #{preparation_network.1} parent=11 // pred_region
        _
      $region16: #{preparation_network.1} parent=11 // pred_fallthru
        _
      // Predicated region
      $region17: #{preparation_network.1} parent=11 // pred_check
        %p165 = pneg %p79
      $region18: #{preparation_network.1} parent=11 // pred_check_branch
        %167 = sbr.rel (%p165) target = $region20
      $region19: #{preparation_network.1} parent=11 // pred_region
        _
      $region20: #{preparation_network.1} parent=11 // pred_fallthru
        _
      // Predicated region
      $region21: #{preparation_network.1} parent=11 // pred_check
        %p168 = pneg %p100
      $region22: #{preparation_network.1} parent=11 // pred_check_branch
        %170 = sbr.rel (%p168) target = $region24
      $region23: #{preparation_network.1} parent=11 // pred_region
        _
      $region24: #{preparation_network.1} parent=11 // pred_fallthru
        _
      // Predicated region
      $region25: #{preparation_network.1} parent=11 // pred_check
        %p171 = pneg %p121
      $region26: #{preparation_network.1} parent=11 // pred_check_branch
        %173 = sbr.rel (%p171) target = $region28
      $region27: #{preparation_network.1} parent=11 // pred_region
        _
      $region28: #{preparation_network.1} parent=11 // pred_fallthru
        _
    $region12: #{preparation_network.1} parent=5 // pred_fallthru
      _
    %p174 = scmp.lt.s32.totalorder %s11, 2
    // Predicated region
    $region29: #{preparation_network.1} parent=5 // pred_check
      %p175 = pneg %p174
    $region30: #{preparation_network.1} parent=5 // pred_check_branch
      %177 = sbr.rel (%p175) target = $region32
    $region31: #{preparation_network.1} parent=5 // pred_region
      // Predicated region
      $region33: #{preparation_network.1} parent=31 // pred_check
        %p178 = pneg %p31
      $region34: #{preparation_network.1} parent=31 // pred_check_branch
        %180 = sbr.rel (%p178) target = $region36
      $region35: #{preparation_network.1} parent=31 // pred_region
        %s181 = smul.u32 32, %s11
        %p182 = scmp.lt.s32.totalorder %s181, 63
        %s183 = scalar_select %p182, %s181, 63
        %s184 = smul.addr %s183, 8
        %s185 = scalar_lea.vmem %s0, %s184
        %s186 = smul.u32 32, %s11
      $region36: #{preparation_network.1} parent=31 // pred_fallthru
        _
    $region32: #{preparation_network.1} parent=5 // pred_fallthru
      _
    %p187 = scmp.le.s32.totalorder 1, %s11
    %p188 = scmp.lt.s32.totalorder %s11, 3
    %p189 = pnand %p187, %p188
    %p190 = pneg %p189
    // Predicated region
    $region37: #{preparation_network.1} parent=5 // pred_check
      _
    $region38: #{preparation_network.1} parent=5 // pred_check_branch
      %192 = sbr.rel (%p189) target = $region40
    $region39: #{preparation_network.1} parent=5 // pred_region
      %s193 = ssub.s32 %s11, 1
      %s194 = smul.u32 32, %s16
      %p195 = scmp.lt.s32.totalorder %s194, 63
      %s196 = scalar_select %p195, %s194, 63
      %s197 = smul.addr %s196, 8
      %s198 = scalar_lea.vmem %s0, %s197
      %p199 = pneg %p37
      %p200 = pneg %p34
      %p201 = pneg %p58
      %p202 = pneg %p55
      %p203 = pneg %p79
      %p204 = pneg %p76
      %p205 = pneg %p100
      %p206 = pneg %p97
      %p207 = pneg %p121
      %p208 = pneg %p118
      %p209 = pneg %p147
      %p210 = pneg %p144
      %s211 = smul.u32 32, %s16
      %p212 = scmp.lt.s32.totalorder %s211, 63
      %s213 = scalar_select %p212, %s211, 63
      %s214 = smul.addr %s213, 8
      %s215 = scalar_lea.vmem %s5, %s214
      %s216 = smul.u32 32, %s16
      %p217 = scmp.lt.s32.totalorder %s216, 63
      %s218 = scalar_select %p217, %s216, 63
      %s219 = smul.addr %s218, 8
      %s220 = scalar_lea.vmem %s0, %s219
      %s221 = smul.u32 32, %s16
      %s222 = smul.u32 32, %s16
      %p223 = scmp.lt.s32.totalorder %s222, 63
      %s224 = scalar_select %p223, %s222, 63
      %s225 = smul.addr %s224, 8
      %s226 = scalar_lea.vmem %s5, %s225
      %s227 = smul.u32 32, %s16
      %v228 = vld [vmem:[%s220] sm:$0xff]
      %v229 = vld [vmem:[%s220 + $0x8] sm:$0xff]
      %v230 = vld [vmem:[%s220 + $0x10] sm:$0xff]
      %v231 = vld [vmem:[%s220 + $0x18] sm:$0xff]
      %v232 = vld [vmem:[%s220 + $0x20] sm:$0xff]
      %v233 = vld [vmem:[%s220 + $0x28] sm:$0xff]
      %v234 = vld [vmem:[%s220 + $0x30] sm:$0xff]
      %v235 = vld [vmem:[%s220 + $0x38] sm:$0xff]
      %v236 = vld [vmem:[%s220 + $0x40] sm:$0xff]
      %v237 = vld [vmem:[%s220 + $0x48] sm:$0xff]
      %v238 = vld [vmem:[%s220 + $0x50] sm:$0xff]
      %v239 = vld [vmem:[%s220 + $0x58] sm:$0xff]
      %v240 = vld [vmem:[%s220 + $0x60] sm:$0xff]
      %v241 = vld [vmem:[%s220 + $0x68] sm:$0xff]
      %v242 = vld [vmem:[%s220 + $0x70] sm:$0xff]
      %v243 = vld [vmem:[%s220 + $0x78] sm:$0xff]
      %v244 = vld [vmem:[%s220 + $0x80] sm:$0xff]
      %v245 = vld [vmem:[%s220 + $0x88] sm:$0xff]
      %v246 = vld [vmem:[%s220 + $0x90] sm:$0xff]
      %v247 = vld [vmem:[%s220 + $0x98] sm:$0xff]
      %v248 = vld [vmem:[%s220 + $0xa0] sm:$0xff]
      %v249 = vld [vmem:[%s220 + $0xa8] sm:$0xff]
      %v250 = vld [vmem:[%s220 + $0xb0] sm:$0xff]
      %v251 = vld [vmem:[%s220 + $0xb8] sm:$0xff]
      %v252 = vld [vmem:[%s220 + $0xc0] sm:$0xff]
      %v253 = vld [vmem:[%s220 + $0xc8] sm:$0xff]
      %v254 = vld [vmem:[%s220 + $0xd0] sm:$0xff]
      %v255 = vld [vmem:[%s220 + $0xd8] sm:$0xff]
      %v256 = vld [vmem:[%s220 + $0xe0] sm:$0xff]
      %v257 = vld [vmem:[%s220 + $0xe8] sm:$0xff]
      %v258 = vld [vmem:[%s220 + $0xf0] sm:$0xff]
      %v259 = vld [vmem:[%s220 + $0xf8] sm:$0xff]
      %v260 = vld [vmem:[%s1] sm:$0xff]
      %v261 = vld [vmem:[%s1 + $0x8] sm:$0xff]
      %v262 = vld [vmem:[%s1 + $0x10] sm:$0xff]
      %v263 = vld [vmem:[%s1 + $0x18] sm:$0x7]
      %v264 = vld [vmem:[%s2] sm:$0x1]
      %v266 = vperm.slane %v264, 0
      %vm268 = vcmask 220160
      %v270 = vsel %vm268, %v228, 0
      %v273 = vsel %vm268, %v229, 0
      %v276 = vsel %vm268, %v230, 0
      %v279 = vsel %vm268, %v231, 0
      %v282 = vsel %vm268, %v232, 0
      %v285 = vsel %vm268, %v233, 0
      %v288 = vsel %vm268, %v234, 0
      %v291 = vsel %vm268, %v235, 0
      %v294 = vsel %vm268, %v236, 0
      %v297 = vsel %vm268, %v237, 0
      %v300 = vsel %vm268, %v238, 0
      %v303 = vsel %vm268, %v239, 0
      %v306 = vsel %vm268, %v240, 0
      %v309 = vsel %vm268, %v241, 0
      %v312 = vsel %vm268, %v242, 0
      %v315 = vsel %vm268, %v243, 0
      %v318 = vsel %vm268, %v244, 0
      %v321 = vsel %vm268, %v245, 0
      %v324 = vsel %vm268, %v246, 0
      %v327 = vsel %vm268, %v247, 0
      %v330 = vsel %vm268, %v248, 0
      %v333 = vsel %vm268, %v249, 0
      %v336 = vsel %vm268, %v250, 0
      %v339 = vsel %vm268, %v251, 0
      %v342 = vsel %vm268, %v252, 0
      %v345 = vsel %vm268, %v253, 0
      %v348 = vsel %vm268, %v254, 0
      %v351 = vsel %vm268, %v255, 0
      %v354 = vsel %vm268, %v256, 0
      %v357 = vsel %vm268, %v257, 0
      %v360 = vsel %vm268, %v258, 0
      %v363 = vsel %vm268, %v259, 0
      %vm365 = vcmask 1042432
      %v367 = vsel %vm365, %v263, 0
      %369 = vmatpush.msra.mxu0 0.0
      %370 = vmatpush.msra.mxu0 0.0
      %371 = vmatpush.msra.mxu0 0.0
      %372 = vmatpush.msra.mxu0 0.0
      %373 = vmatpush.msra.mxu0 0.0
      %374 = vmatpush.msra.mxu0 0.0
      %375 = vmatpush.msra.mxu0 0.0
      %376 = vmatpush.msra.mxu0 0.0
      %377 = vmatpush.msra.mxu0 0.0
      %378 = vmatpush.msra.mxu0 0.0
      %379 = vmatpush.msra.mxu0 0.0
      %380 = vmatpush.msra.mxu0 0.0
      %381 = vmatpush.msra.mxu0 %v367
      %382 = vmatpush.msra.mxu0 %v262
      %383 = vmatpush.msra.mxu0 %v261
      %384 = vmatpush.msra.mxu0 %v260
      %385 = vmatmul.f32.gmra.mxu0 %v270
      %v386 = vpop.f32.mrf.mxu0
      %v387 = vadd.f32 %v266, %v386
      %388 = vmatmul.f32.gmra.mxu0 %v273
      %v389 = vpop.f32.mrf.mxu0
      %v390 = vadd.f32 %v266, %v389
      %391 = vmatmul.f32.gmra.mxu0 %v276
      %v392 = vpop.f32.mrf.mxu0
      %v393 = vadd.f32 %v266, %v392
      %394 = vmatmul.f32.gmra.mxu0 %v279
      %v395 = vpop.f32.mrf.mxu0
      %v396 = vadd.f32 %v266, %v395
      %397 = vmatmul.f32.gmra.mxu0 %v282
      %v398 = vpop.f32.mrf.mxu0
      %v399 = vadd.f32 %v266, %v398
      %400 = vmatmul.f32.gmra.mxu0 %v285
      %v401 = vpop.f32.mrf.mxu0
      %v402 = vadd.f32 %v266, %v401
      %403 = vmatmul.f32.gmra.mxu0 %v288
      %v404 = vpop.f32.mrf.mxu0
      %v405 = vadd.f32 %v266, %v404
      %406 = vmatmul.f32.gmra.mxu0 %v291
      %v407 = vpop.f32.mrf.mxu0
      %v408 = vadd.f32 %v266, %v407
      %409 = vmatmul.f32.gmra.mxu0 %v294
      %v410 = vpop.f32.mrf.mxu0
      %v411 = vadd.f32 %v266, %v410
      %412 = vmatmul.f32.gmra.mxu0 %v297
      %v413 = vpop.f32.mrf.mxu0
      %v414 = vadd.f32 %v266, %v413
      %415 = vmatmul.f32.gmra.mxu0 %v300
      %v416 = vpop.f32.mrf.mxu0
      %v417 = vadd.f32 %v266, %v416
      %418 = vmatmul.f32.gmra.mxu0 %v303
      %v419 = vpop.f32.mrf.mxu0
      %v420 = vadd.f32 %v266, %v419
      %421 = vmatmul.f32.gmra.mxu0 %v306
      %v422 = vpop.f32.mrf.mxu0
      %v423 = vadd.f32 %v266, %v422
      %424 = vmatmul.f32.gmra.mxu0 %v309
      %v425 = vpop.f32.mrf.mxu0
      %v426 = vadd.f32 %v266, %v425
      %427 = vmatmul.f32.gmra.mxu0 %v312
      %v428 = vpop.f32.mrf.mxu0
      %v429 = vadd.f32 %v266, %v428
      %430 = vmatmul.f32.gmra.mxu0 %v315
      %v431 = vpop.f32.mrf.mxu0
      %v432 = vadd.f32 %v266, %v431
      %433 = vmatmul.f32.gmra.mxu0 %v318
      %v434 = vpop.f32.mrf.mxu0
      %v435 = vadd.f32 %v266, %v434
      %436 = vmatmul.f32.gmra.mxu0 %v321
      %v437 = vpop.f32.mrf.mxu0
      %v438 = vadd.f32 %v266, %v437
      %439 = vmatmul.f32.gmra.mxu0 %v324
      %v440 = vpop.f32.mrf.mxu0
      %v441 = vadd.f32 %v266, %v440
      %442 = vmatmul.f32.gmra.mxu0 %v327
      %v443 = vpop.f32.mrf.mxu0
      %v444 = vadd.f32 %v266, %v443
      %445 = vmatmul.f32.gmra.mxu0 %v330
      %v446 = vpop.f32.mrf.mxu0
      %v447 = vadd.f32 %v266, %v446
      %448 = vmatmul.f32.gmra.mxu0 %v333
      %v449 = vpop.f32.mrf.mxu0
      %v450 = vadd.f32 %v266, %v449
      %451 = vmatmul.f32.gmra.mxu0 %v336
      %v452 = vpop.f32.mrf.mxu0
      %v453 = vadd.f32 %v266, %v452
      %454 = vmatmul.f32.gmra.mxu0 %v339
      %v455 = vpop.f32.mrf.mxu0
      %v456 = vadd.f32 %v266, %v455
      %457 = vmatmul.f32.gmra.mxu0 %v342
      %v458 = vpop.f32.mrf.mxu0
      %v459 = vadd.f32 %v266, %v458
      %460 = vmatmul.f32.gmra.mxu0 %v345
      %v461 = vpop.f32.mrf.mxu0
      %v462 = vadd.f32 %v266, %v461
      %463 = vmatmul.f32.gmra.mxu0 %v348
      %v464 = vpop.f32.mrf.mxu0
      %v465 = vadd.f32 %v266, %v464
      %466 = vmatmul.f32.gmra.mxu0 %v351
      %v467 = vpop.f32.mrf.mxu0
      %v468 = vadd.f32 %v266, %v467
      %469 = vmatmul.f32.gmra.mxu0 %v354
      %v470 = vpop.f32.mrf.mxu0
      %v471 = vadd.f32 %v266, %v470
      %472 = vmatmul.f32.gmra.mxu0 %v357
      %v473 = vpop.f32.mrf.mxu0
      %v474 = vadd.f32 %v266, %v473
      %475 = vmatmul.f32.gmra.mxu0 %v360
      %v476 = vpop.f32.mrf.mxu0
      %v477 = vadd.f32 %v266, %v476
      %478 = vmatmul.f32.gmra.mxu0 %v363
      %v479 = vpop.f32.mrf.mxu0
      %v480 = vadd.f32 %v266, %v479
      %481 = vdwg.mxu0
      %v482 = vmax.f32 %v387, 0.0
      %v483 = vmax.f32 %v390, 0.0
      %v484 = vmax.f32 %v393, 0.0
      %v485 = vmax.f32 %v396, 0.0
      %v486 = vmax.f32 %v399, 0.0
      %v487 = vmax.f32 %v402, 0.0
      %v488 = vmax.f32 %v405, 0.0
      %v489 = vmax.f32 %v408, 0.0
      %v490 = vmax.f32 %v411, 0.0
      %v491 = vmax.f32 %v414, 0.0
      %v492 = vmax.f32 %v417, 0.0
      %v493 = vmax.f32 %v420, 0.0
      %v494 = vmax.f32 %v423, 0.0
      %v495 = vmax.f32 %v426, 0.0
      %v496 = vmax.f32 %v429, 0.0
      %v497 = vmax.f32 %v432, 0.0
      %v498 = vmax.f32 %v435, 0.0
      %v499 = vmax.f32 %v438, 0.0
      %v500 = vmax.f32 %v441, 0.0
      %v501 = vmax.f32 %v444, 0.0
      %v502 = vmax.f32 %v447, 0.0
      %v503 = vmax.f32 %v450, 0.0
      %v504 = vmax.f32 %v453, 0.0
      %v505 = vmax.f32 %v456, 0.0
      %v506 = vmax.f32 %v459, 0.0
      %v507 = vmax.f32 %v462, 0.0
      %v508 = vmax.f32 %v465, 0.0
      %v509 = vmax.f32 %v468, 0.0
      %v510 = vmax.f32 %v471, 0.0
      %v511 = vmax.f32 %v474, 0.0
      %v512 = vmax.f32 %v477, 0.0
      %v513 = vmax.f32 %v480, 0.0
      %514 = vst [vmem:[#allocation2] sm:$0xff] 0.0
      %515 = vst [vmem:[#allocation2 + $0x8] sm:$0xff] 0.0
      %516 = vst [vmem:[#allocation2 + $0x10] sm:$0x3] 0.0
      %517 = vst [vmem:[#allocation2 + $0x18] sm:$0xff] 0.0
      %518 = vst [vmem:[#allocation2 + $0x20] sm:$0xff] 0.0
      %519 = vst [vmem:[#allocation2 + $0x28] sm:$0x3] 0.0
      %520 = vst [vmem:[#allocation2 + $0x30] sm:$0xff] 0.0
      %521 = vst [vmem:[#allocation2 + $0x38] sm:$0xff] 0.0
      %522 = vst [vmem:[#allocation2 + $0x40] sm:$0x3] 0.0
      %523 = vst [vmem:[#allocation2 + $0x48] sm:$0xff] 0.0
      %524 = vst [vmem:[#allocation2 + $0x50] sm:$0xff] 0.0
      %525 = vst [vmem:[#allocation2 + $0x58] sm:$0x3] 0.0
      %526 = vst [vmem:[#allocation2 + $0x60] sm:$0xff] 0.0
      %527 = vst [vmem:[#allocation2 + $0x68] sm:$0xff] 0.0
      %528 = vst [vmem:[#allocation2 + $0x70] sm:$0x3] 0.0
      %529 = vst [vmem:[#allocation2 + $0x78] sm:$0xff] 0.0
      %530 = vst [vmem:[#allocation2 + $0x80] sm:$0xff] 0.0
      %531 = vst [vmem:[#allocation2 + $0x88] sm:$0x3] 0.0
      %532 = vst [vmem:[#allocation2 + $0x90] sm:$0xff] 0.0
      %533 = vst [vmem:[#allocation2 + $0x98] sm:$0xff] 0.0
      %534 = vst [vmem:[#allocation2 + $0xa0] sm:$0x3] 0.0
      %535 = vst [vmem:[#allocation2 + $0xa8] sm:$0xff] 0.0
      %536 = vst [vmem:[#allocation2 + $0xb0] sm:$0xff] 0.0
      %537 = vst [vmem:[#allocation2 + $0xb8] sm:$0x3] 0.0
      %538 = vst [vmem:[#allocation2 + $0xc0] sm:$0xff] 0.0
      %539 = vst [vmem:[#allocation2 + $0xc8] sm:$0xff] 0.0
      %540 = vst [vmem:[#allocation2 + $0xd0] sm:$0x3] 0.0
      %541 = vst [vmem:[#allocation2 + $0xd8] sm:$0xff] 0.0
      %542 = vst [vmem:[#allocation2 + $0xe0] sm:$0xff] 0.0
      %543 = vst [vmem:[#allocation2 + $0xe8] sm:$0x3] 0.0
      %544 = vst [vmem:[#allocation2 + $0xf0] sm:$0xff] 0.0
      %545 = vst [vmem:[#allocation2 + $0xf8] sm:$0xff] 0.0
      %546 = vst [vmem:[#allocation2 + $0x100] sm:$0x3] 0.0
      %547 = vst [vmem:[#allocation2 + $0x108] sm:$0xff] 0.0
      %548 = vst [vmem:[#allocation2 + $0x110] sm:$0xff] 0.0
      %549 = vst [vmem:[#allocation2 + $0x118] sm:$0x3] 0.0
      %550 = vst [vmem:[#allocation2 + $0x120] sm:$0xff] 0.0
      %551 = vst [vmem:[#allocation2 + $0x128] sm:$0xff] 0.0
      %552 = vst [vmem:[#allocation2 + $0x130] sm:$0x3] 0.0
      %553 = vst [vmem:[#allocation2 + $0x138] sm:$0xff] 0.0
      %554 = vst [vmem:[#allocation2 + $0x140] sm:$0xff] 0.0
      %555 = vst [vmem:[#allocation2 + $0x148] sm:$0x3] 0.0
      %556 = vst [vmem:[#allocation2 + $0x150] sm:$0xff] 0.0
      %557 = vst [vmem:[#allocation2 + $0x158] sm:$0xff] 0.0
      %558 = vst [vmem:[#allocation2 + $0x160] sm:$0x3] 0.0
      %559 = vst [vmem:[#allocation2 + $0x168] sm:$0xff] 0.0
      %560 = vst [vmem:[#allocation2 + $0x170] sm:$0xff] 0.0
      %561 = vst [vmem:[#allocation2 + $0x178] sm:$0x3] 0.0
      %562 = vst [vmem:[#allocation2 + $0x180] sm:$0xff] 0.0
      %563 = vst [vmem:[#allocation2 + $0x188] sm:$0xff] 0.0
      %564 = vst [vmem:[#allocation2 + $0x190] sm:$0x3] 0.0
      %565 = vst [vmem:[#allocation2 + $0x198] sm:$0xff] 0.0
      %566 = vst [vmem:[#allocation2 + $0x1a0] sm:$0xff] 0.0
      %567 = vst [vmem:[#allocation2 + $0x1a8] sm:$0x3] 0.0
      %s568 = scalar_lea.vmem [#allocation2], 24
      %569 = vst [vmem:[%s568 + $0x1] sm:$0xff] %v482
      %570 = vst [vmem:[%s568 + $0x9] sm:$0xff] %v483
      %571 = vst [vmem:[%s568 + $0x19] sm:$0xff] %v484
      %572 = vst [vmem:[%s568 + $0x21] sm:$0xff] %v485
      %573 = vst [vmem:[%s568 + $0x31] sm:$0xff] %v486
      %574 = vst [vmem:[%s568 + $0x39] sm:$0xff] %v487
      %575 = vst [vmem:[%s568 + $0x49] sm:$0xff] %v488
      %576 = vst [vmem:[%s568 + $0x51] sm:$0xff] %v489
      %577 = vst [vmem:[%s568 + $0x61] sm:$0xff] %v490
      %578 = vst [vmem:[%s568 + $0x69] sm:$0xff] %v491
      %579 = vst [vmem:[%s568 + $0x79] sm:$0xff] %v492
      %580 = vst [vmem:[%s568 + $0x81] sm:$0xff] %v493
      %581 = vst [vmem:[%s568 + $0x91] sm:$0xff] %v494
      %582 = vst [vmem:[%s568 + $0x99] sm:$0xff] %v495
      %583 = vst [vmem:[%s568 + $0xa9] sm:$0xff] %v496
      %584 = vst [vmem:[%s568 + $0xb1] sm:$0xff] %v497
      %585 = vst [vmem:[%s568 + $0xc1] sm:$0xff] %v498
      %586 = vst [vmem:[%s568 + $0xc9] sm:$0xff] %v499
      %587 = vst [vmem:[%s568 + $0xd9] sm:$0xff] %v500
      %588 = vst [vmem:[%s568 + $0xe1] sm:$0xff] %v501
      %589 = vst [vmem:[%s568 + $0xf1] sm:$0xff] %v502
      %590 = vst [vmem:[%s568 + $0xf9] sm:$0xff] %v503
      %591 = vst [vmem:[%s568 + $0x109] sm:$0xff] %v504
      %592 = vst [vmem:[%s568 + $0x111] sm:$0xff] %v505
      %593 = vst [vmem:[%s568 + $0x121] sm:$0xff] %v506
      %594 = vst [vmem:[%s568 + $0x129] sm:$0xff] %v507
      %595 = vst [vmem:[%s568 + $0x139] sm:$0xff] %v508
      %596 = vst [vmem:[%s568 + $0x141] sm:$0xff] %v509
      %597 = vst [vmem:[%s568 + $0x151] sm:$0xff] %v510
      %598 = vst [vmem:[%s568 + $0x159] sm:$0xff] %v511
      %599 = vst [vmem:[%s568 + $0x169] sm:$0xff] %v512
      %600 = vst [vmem:[%s568 + $0x171] sm:$0xff] %v513
      %v601 = vld [vmem:[#allocation2] sm:$0xff]
      %v602 = vld [vmem:[#allocation2 + $0x8] sm:$0xff]
      %v603 = vld [vmem:[#allocation2 + $0x18] sm:$0xff]
      %v604 = vld [vmem:[#allocation2 + $0x20] sm:$0xff]
      %v605 = vld [vmem:[#allocation2 + $0x30] sm:$0xff]
      %v606 = vld [vmem:[#allocation2 + $0x38] sm:$0xff]
      %v607 = vld [vmem:[#allocation2 + $0x48] sm:$0xff]
      %v608 = vld [vmem:[#allocation2 + $0x50] sm:$0xff]
      %v609 = vld [vmem:[#allocation2 + $0x60] sm:$0xff]
      %v610 = vld [vmem:[#allocation2 + $0x68] sm:$0xff]
      %v611 = vld [vmem:[#allocation2 + $0x78] sm:$0xff]
      %v612 = vld [vmem:[#allocation2 + $0x80] sm:$0xff]
      %v613 = vld [vmem:[#allocation2 + $0x90] sm:$0xff]
      %v614 = vld [vmem:[#allocation2 + $0x98] sm:$0xff]
      %v615 = vld [vmem:[#allocation2 + $0xa8] sm:$0xff]
      %v616 = vld [vmem:[#allocation2 + $0xb0] sm:$0xff]
      %v617 = vld [vmem:[#allocation2 + $0xc0] sm:$0xff]
      %v618 = vld [vmem:[#allocation2 + $0xc8] sm:$0xff]
      %v619 = vld [vmem:[#allocation2 + $0xd8] sm:$0xff]
      %v620 = vld [vmem:[#allocation2 + $0xe0] sm:$0xff]
      %v621 = vld [vmem:[#allocation2 + $0xf0] sm:$0xff]
      %v622 = vld [vmem:[#allocation2 + $0xf8] sm:$0xff]
      %v623 = vld [vmem:[#allocation2 + $0x108] sm:$0xff]
      %v624 = vld [vmem:[#allocation2 + $0x110] sm:$0xff]
      %v625 = vld [vmem:[#allocation2 + $0x120] sm:$0xff]
      %v626 = vld [vmem:[#allocation2 + $0x128] sm:$0xff]
      %v627 = vld [vmem:[#allocation2 + $0x138] sm:$0xff]
      %v628 = vld [vmem:[#allocation2 + $0x140] sm:$0xff]
      %v629 = vld [vmem:[#allocation2 + $0x150] sm:$0xff]
      %v630 = vld [vmem:[#allocation2 + $0x158] sm:$0xff]
      %v631 = vld [vmem:[#allocation2 + $0x168] sm:$0xff]
      %v632 = vld [vmem:[#allocation2 + $0x170] sm:$0xff]
      %v633 = vld [vmem:[%s3] sm:$0xff]
      %v634 = vld [vmem:[%s3 + $0x8] sm:$0xff]
      %v635 = vld [vmem:[%s3 + $0x10] sm:$0xff]
      %v636 = vld [vmem:[%s3 + $0x18] sm:$0xff]
      %v637 = vld [vmem:[%s3 + $0x20] sm:$0xff]
      %v638 = vld [vmem:[%s3 + $0x28] sm:$0xff]
      %v639 = vld [vmem:[%s3 + $0x30] sm:$0xff]
      %v640 = vld [vmem:[%s3 + $0x38] sm:$0xff]
      %v641 = vld [vmem:[%s3 + $0x40] sm:$0xff]
      %v642 = vld [vmem:[%s3 + $0x48] sm:$0xff]
      %v643 = vld [vmem:[%s3 + $0x50] sm:$0xff]
      %v644 = vld [vmem:[%s3 + $0x58] sm:$0xff]
      %v645 = vld [vmem:[%s3 + $0x60] sm:$0xff]
      %v646 = vld [vmem:[%s3 + $0x68] sm:$0xff]
      %v647 = vld [vmem:[%s3 + $0x70] sm:$0xff]
      %v648 = vld [vmem:[%s3 + $0x78] sm:$0xff]
      %v649 = vld [vmem:[#allocation2 + $0x1] sm:$0xff]
      %v650 = vld [vmem:[#allocation2 + $0x9] sm:$0xff]
      %v651 = vld [vmem:[#allocation2 + $0x19] sm:$0xff]
      %v652 = vld [vmem:[#allocation2 + $0x21] sm:$0xff]
      %v653 = vld [vmem:[#allocation2 + $0x31] sm:$0xff]
      %v654 = vld [vmem:[#allocation2 + $0x39] sm:$0xff]
      %v655 = vld [vmem:[#allocation2 + $0x49] sm:$0xff]
      %v656 = vld [vmem:[#allocation2 + $0x51] sm:$0xff]
      %v657 = vld [vmem:[#allocation2 + $0x61] sm:$0xff]
      %v658 = vld [vmem:[#allocation2 + $0x69] sm:$0xff]
      %v659 = vld [vmem:[#allocation2 + $0x79] sm:$0xff]
      %v660 = vld [vmem:[#allocation2 + $0x81] sm:$0xff]
      %v661 = vld [vmem:[#allocation2 + $0x91] sm:$0xff]
      %v662 = vld [vmem:[#allocation2 + $0x99] sm:$0xff]
      %v663 = vld [vmem:[#allocation2 + $0xa9] sm:$0xff]
      %v664 = vld [vmem:[#allocation2 + $0xb1] sm:$0xff]
      %v665 = vld [vmem:[#allocation2 + $0xc1] sm:$0xff]
      %v666 = vld [vmem:[#allocation2 + $0xc9] sm:$0xff]
      %v667 = vld [vmem:[#allocation2 + $0xd9] sm:$0xff]
      %v668 = vld [vmem:[#allocation2 + $0xe1] sm:$0xff]
      %v669 = vld [vmem:[#allocation2 + $0xf1] sm:$0xff]
      %v670 = vld [vmem:[#allocation2 + $0xf9] sm:$0xff]
      %v671 = vld [vmem:[#allocation2 + $0x109] sm:$0xff]
      %v672 = vld [vmem:[#allocation2 + $0x111] sm:$0xff]
      %v673 = vld [vmem:[#allocation2 + $0x121] sm:$0xff]
      %v674 = vld [vmem:[#allocation2 + $0x129] sm:$0xff]
      %v675 = vld [vmem:[#allocation2 + $0x139] sm:$0xff]
      %v676 = vld [vmem:[#allocation2 + $0x141] sm:$0xff]
      %v677 = vld [vmem:[#allocation2 + $0x151] sm:$0xff]
      %v678 = vld [vmem:[#allocation2 + $0x159] sm:$0xff]
      %v679 = vld [vmem:[#allocation2 + $0x169] sm:$0xff]
      %v680 = vld [vmem:[#allocation2 + $0x171] sm:$0xff]
      %s681 = scalar_lea.vmem %s3, 128
      %v682 = vld [vmem:[%s681] sm:$0xff]
      %v683 = vld [vmem:[%s681 + $0x8] sm:$0xff]
      %v684 = vld [vmem:[%s681 + $0x10] sm:$0xff]
      %v685 = vld [vmem:[%s681 + $0x18] sm:$0xff]
      %v686 = vld [vmem:[%s681 + $0x20] sm:$0xff]
      %v687 = vld [vmem:[%s681 + $0x28] sm:$0xff]
      %v688 = vld [vmem:[%s681 + $0x30] sm:$0xff]
      %v689 = vld [vmem:[%s681 + $0x38] sm:$0xff]
      %v690 = vld [vmem:[%s681 + $0x40] sm:$0xff]
      %v691 = vld [vmem:[%s681 + $0x48] sm:$0xff]
      %v692 = vld [vmem:[%s681 + $0x50] sm:$0xff]
      %v693 = vld [vmem:[%s681 + $0x58] sm:$0xff]
      %v694 = vld [vmem:[%s681 + $0x60] sm:$0xff]
      %v695 = vld [vmem:[%s681 + $0x68] sm:$0xff]
      %v696 = vld [vmem:[%s681 + $0x70] sm:$0xff]
      %v697 = vld [vmem:[%s681 + $0x78] sm:$0xff]
      %698 = vmatpush.msra.mxu0 %v697
      %699 = vmatpush.msra.mxu0 %v696
      %700 = vmatpush.msra.mxu0 %v695
      %701 = vmatpush.msra.mxu0 %v694
      %702 = vmatpush.msra.mxu0 %v693
      %703 = vmatpush.msra.mxu0 %v692
      %704 = vmatpush.msra.mxu0 %v691
      %705 = vmatpush.msra.mxu0 %v690
      %706 = vmatpush.msra.mxu0 %v689
      %707 = vmatpush.msra.mxu0 %v688
      %708 = vmatpush.msra.mxu0 %v687
      %709 = vmatpush.msra.mxu0 %v686
      %710 = vmatpush.msra.mxu0 %v685
      %711 = vmatpush.msra.mxu0 %v684
      %712 = vmatpush.msra.mxu0 %v683
      %713 = vmatpush.msra.mxu0 %v682
      %714 = vmatmul.f32.gmra.mxu0 %v649
      %v715 = vpop.f32.mrf.mxu0
      %v716 = vadd.f32 0.0, %v715
      %717 = vmatmul.f32.gmra.mxu0 %v650
      %v718 = vpop.f32.mrf.mxu0
      %v719 = vadd.f32 0.0, %v718
      %720 = vmatmul.f32.gmra.mxu0 %v651
      %v721 = vpop.f32.mrf.mxu0
      %v722 = vadd.f32 0.0, %v721
      %723 = vmatmul.f32.gmra.mxu0 %v652
      %v724 = vpop.f32.mrf.mxu0
      %v725 = vadd.f32 0.0, %v724
      %726 = vmatmul.f32.gmra.mxu0 %v653
      %v727 = vpop.f32.mrf.mxu0
      %v728 = vadd.f32 0.0, %v727
      %729 = vmatmul.f32.gmra.mxu0 %v654
      %v730 = vpop.f32.mrf.mxu0
      %v731 = vadd.f32 0.0, %v730
      %732 = vmatmul.f32.gmra.mxu0 %v655
      %v733 = vpop.f32.mrf.mxu0
      %v734 = vadd.f32 0.0, %v733
      %735 = vmatmul.f32.gmra.mxu0 %v656
      %v736 = vpop.f32.mrf.mxu0
      %v737 = vadd.f32 0.0, %v736
      %738 = vmatmul.f32.gmra.mxu0 %v657
      %v739 = vpop.f32.mrf.mxu0
      %v740 = vadd.f32 0.0, %v739
      %741 = vmatmul.f32.gmra.mxu0 %v658
      %v742 = vpop.f32.mrf.mxu0
      %v743 = vadd.f32 0.0, %v742
      %744 = vmatmul.f32.gmra.mxu0 %v659
      %v745 = vpop.f32.mrf.mxu0
      %v746 = vadd.f32 0.0, %v745
      %747 = vmatmul.f32.gmra.mxu0 %v660
      %v748 = vpop.f32.mrf.mxu0
      %v749 = vadd.f32 0.0, %v748
      %750 = vmatmul.f32.gmra.mxu0 %v661
      %v751 = vpop.f32.mrf.mxu0
      %v752 = vadd.f32 0.0, %v751
      %753 = vmatmul.f32.gmra.mxu0 %v662
      %v754 = vpop.f32.mrf.mxu0
      %v755 = vadd.f32 0.0, %v754
      %756 = vmatmul.f32.gmra.mxu0 %v663
      %v757 = vpop.f32.mrf.mxu0
      %v758 = vadd.f32 0.0, %v757
      %759 = vmatmul.f32.gmra.mxu0 %v664
      %v760 = vpop.f32.mrf.mxu0
      %v761 = vadd.f32 0.0, %v760
      %762 = vmatmul.f32.gmra.mxu0 %v665
      %v763 = vpop.f32.mrf.mxu0
      %v764 = vadd.f32 0.0, %v763
      %765 = vmatmul.f32.gmra.mxu0 %v666
      %v766 = vpop.f32.mrf.mxu0
      %v767 = vadd.f32 0.0, %v766
      %768 = vmatmul.f32.gmra.mxu0 %v667
      %v769 = vpop.f32.mrf.mxu0
      %v770 = vadd.f32 0.0, %v769
      %771 = vmatmul.f32.gmra.mxu0 %v668
      %v772 = vpop.f32.mrf.mxu0
      %v773 = vadd.f32 0.0, %v772
      %774 = vmatmul.f32.gmra.mxu0 %v669
      %v775 = vpop.f32.mrf.mxu0
      %v776 = vadd.f32 0.0, %v775
      %777 = vmatmul.f32.gmra.mxu0 %v670
      %v778 = vpop.f32.mrf.mxu0
      %v779 = vadd.f32 0.0, %v778
      %780 = vmatmul.f32.gmra.mxu0 %v671
      %v781 = vpop.f32.mrf.mxu0
      %v782 = vadd.f32 0.0, %v781
      %783 = vmatmul.f32.gmra.mxu0 %v672
      %v784 = vpop.f32.mrf.mxu0
      %v785 = vadd.f32 0.0, %v784
      %786 = vmatmul.f32.gmra.mxu0 %v673
      %v787 = vpop.f32.mrf.mxu0
      %v788 = vadd.f32 0.0, %v787
      %789 = vmatmul.f32.gmra.mxu0 %v674
      %v790 = vpop.f32.mrf.mxu0
      %v791 = vadd.f32 0.0, %v790
      %792 = vmatmul.f32.gmra.mxu0 %v675
      %v793 = vpop.f32.mrf.mxu0
      %v794 = vadd.f32 0.0, %v793
      %795 = vmatmul.f32.gmra.mxu0 %v676
      %v796 = vpop.f32.mrf.mxu0
      %v797 = vadd.f32 0.0, %v796
      %798 = vmatmul.f32.gmra.mxu0 %v677
      %v799 = vpop.f32.mrf.mxu0
      %v800 = vadd.f32 0.0, %v799
      %801 = vmatmul.f32.gmra.mxu0 %v678
      %v802 = vpop.f32.mrf.mxu0
      %v803 = vadd.f32 0.0, %v802
      %804 = vmatmul.f32.gmra.mxu0 %v679
      %v805 = vpop.f32.mrf.mxu0
      %v806 = vadd.f32 0.0, %v805
      %807 = vmatmul.f32.gmra.mxu0 %v680
      %v808 = vpop.f32.mrf.mxu0
      %v809 = vadd.f32 0.0, %v808
      %810 = vdwg.mxu0
      %811 = vmatpush.msra.mxu0 %v648
      %812 = vmatpush.msra.mxu0 %v647
      %813 = vmatpush.msra.mxu0 %v646
      %814 = vmatpush.msra.mxu0 %v645
      %815 = vmatpush.msra.mxu0 %v644
      %816 = vmatpush.msra.mxu0 %v643
      %817 = vmatpush.msra.mxu0 %v642
      %818 = vmatpush.msra.mxu0 %v641
      %819 = vmatpush.msra.mxu0 %v640
      %820 = vmatpush.msra.mxu0 %v639
      %821 = vmatpush.msra.mxu0 %v638
      %822 = vmatpush.msra.mxu0 %v637
      %823 = vmatpush.msra.mxu0 %v636
      %824 = vmatpush.msra.mxu0 %v635
      %825 = vmatpush.msra.mxu0 %v634
      %826 = vmatpush.msra.mxu0 %v633
      %827 = vmatmul.f32.gmra.mxu0 %v601
      %v828 = vpop.f32.mrf.mxu0
      %v829 = vadd.f32 %v716, %v828
      %830 = vmatmul.f32.gmra.mxu0 %v602
      %v831 = vpop.f32.mrf.mxu0
      %v832 = vadd.f32 %v719, %v831
      %833 = vmatmul.f32.gmra.mxu0 %v603
      %v834 = vpop.f32.mrf.mxu0
      %v835 = vadd.f32 %v722, %v834
      %836 = vmatmul.f32.gmra.mxu0 %v604
      %v837 = vpop.f32.mrf.mxu0
      %v838 = vadd.f32 %v725, %v837
      %839 = vmatmul.f32.gmra.mxu0 %v605
      %v840 = vpop.f32.mrf.mxu0
      %v841 = vadd.f32 %v728, %v840
      %842 = vmatmul.f32.gmra.mxu0 %v606
      %v843 = vpop.f32.mrf.mxu0
      %v844 = vadd.f32 %v731, %v843
      %845 = vmatmul.f32.gmra.mxu0 %v607
      %v846 = vpop.f32.mrf.mxu0
      %v847 = vadd.f32 %v734, %v846
      %848 = vmatmul.f32.gmra.mxu0 %v608
      %v849 = vpop.f32.mrf.mxu0
      %v850 = vadd.f32 %v737, %v849
      %851 = vmatmul.f32.gmra.mxu0 %v609
      %v852 = vpop.f32.mrf.mxu0
      %v853 = vadd.f32 %v740, %v852
      %854 = vmatmul.f32.gmra.mxu0 %v610
      %v855 = vpop.f32.mrf.mxu0
      %v856 = vadd.f32 %v743, %v855
      %857 = vmatmul.f32.gmra.mxu0 %v611
      %v858 = vpop.f32.mrf.mxu0
      %v859 = vadd.f32 %v746, %v858
      %860 = vmatmul.f32.gmra.mxu0 %v612
      %v861 = vpop.f32.mrf.mxu0
      %v862 = vadd.f32 %v749, %v861
      %863 = vmatmul.f32.gmra.mxu0 %v613
      %v864 = vpop.f32.mrf.mxu0
      %v865 = vadd.f32 %v752, %v864
      %866 = vmatmul.f32.gmra.mxu0 %v614
      %v867 = vpop.f32.mrf.mxu0
      %v868 = vadd.f32 %v755, %v867
      %869 = vmatmul.f32.gmra.mxu0 %v615
      %v870 = vpop.f32.mrf.mxu0
      %v871 = vadd.f32 %v758, %v870
      %872 = vmatmul.f32.gmra.mxu0 %v616
      %v873 = vpop.f32.mrf.mxu0
      %v874 = vadd.f32 %v761, %v873
      %875 = vmatmul.f32.gmra.mxu0 %v617
      %v876 = vpop.f32.mrf.mxu0
      %v877 = vadd.f32 %v764, %v876
      %878 = vmatmul.f32.gmra.mxu0 %v618
      %v879 = vpop.f32.mrf.mxu0
      %v880 = vadd.f32 %v767, %v879
      %881 = vmatmul.f32.gmra.mxu0 %v619
      %v882 = vpop.f32.mrf.mxu0
      %v883 = vadd.f32 %v770, %v882
      %884 = vmatmul.f32.gmra.mxu0 %v620
      %v885 = vpop.f32.mrf.mxu0
      %v886 = vadd.f32 %v773, %v885
      %887 = vmatmul.f32.gmra.mxu0 %v621
      %v888 = vpop.f32.mrf.mxu0
      %v889 = vadd.f32 %v776, %v888
      %890 = vmatmul.f32.gmra.mxu0 %v622
      %v891 = vpop.f32.mrf.mxu0
      %v892 = vadd.f32 %v779, %v891
      %893 = vmatmul.f32.gmra.mxu0 %v623
      %v894 = vpop.f32.mrf.mxu0
      %v895 = vadd.f32 %v782, %v894
      %896 = vmatmul.f32.gmra.mxu0 %v624
      %v897 = vpop.f32.mrf.mxu0
      %v898 = vadd.f32 %v785, %v897
      %899 = vmatmul.f32.gmra.mxu0 %v625
      %v900 = vpop.f32.mrf.mxu0
      %v901 = vadd.f32 %v788, %v900
      %902 = vmatmul.f32.gmra.mxu0 %v626
      %v903 = vpop.f32.mrf.mxu0
      %v904 = vadd.f32 %v791, %v903
      %905 = vmatmul.f32.gmra.mxu0 %v627
      %v906 = vpop.f32.mrf.mxu0
      %v907 = vadd.f32 %v794, %v906
      %908 = vmatmul.f32.gmra.mxu0 %v628
      %v909 = vpop.f32.mrf.mxu0
      %v910 = vadd.f32 %v797, %v909
      %911 = vmatmul.f32.gmra.mxu0 %v629
      %v912 = vpop.f32.mrf.mxu0
      %v913 = vadd.f32 %v800, %v912
      %914 = vmatmul.f32.gmra.mxu0 %v630
      %v915 = vpop.f32.mrf.mxu0
      %v916 = vadd.f32 %v803, %v915
      %917 = vmatmul.f32.gmra.mxu0 %v631
      %v918 = vpop.f32.mrf.mxu0
      %v919 = vadd.f32 %v806, %v918
      %920 = vmatmul.f32.gmra.mxu0 %v632
      %v921 = vpop.f32.mrf.mxu0
      %v922 = vadd.f32 %v809, %v921
      %923 = vdwg.mxu0
      %v924 = vld [vmem:[#allocation2 + $0x2] sm:$0xff]
      %v925 = vld [vmem:[#allocation2 + $0xa] sm:$0xff]
      %v926 = vld [vmem:[#allocation2 + $0x1a] sm:$0xff]
      %v927 = vld [vmem:[#allocation2 + $0x22] sm:$0xff]
      %v928 = vld [vmem:[#allocation2 + $0x32] sm:$0xff]
      %v929 = vld [vmem:[#allocation2 + $0x3a] sm:$0xff]
      %v930 = vld [vmem:[#allocation2 + $0x4a] sm:$0xff]
      %v931 = vld [vmem:[#allocation2 + $0x52] sm:$0xff]
      %v932 = vld [vmem:[#allocation2 + $0x62] sm:$0xff]
      %v933 = vld [vmem:[#allocation2 + $0x6a] sm:$0xff]
      %v934 = vld [vmem:[#allocation2 + $0x7a] sm:$0xff]
      %v935 = vld [vmem:[#allocation2 + $0x82] sm:$0xff]
      %v936 = vld [vmem:[#allocation2 + $0x92] sm:$0xff]
      %v937 = vld [vmem:[#allocation2 + $0x9a] sm:$0xff]
      %v938 = vld [vmem:[#allocation2 + $0xaa] sm:$0xff]
      %v939 = vld [vmem:[#allocation2 + $0xb2] sm:$0xff]
      %v940 = vld [vmem:[#allocation2 + $0xc2] sm:$0xff]
      %v941 = vld [vmem:[#allocation2 + $0xca] sm:$0xff]
      %v942 = vld [vmem:[#allocation2 + $0xda] sm:$0xff]
      %v943 = vld [vmem:[#allocation2 + $0xe2] sm:$0xff]
      %v944 = vld [vmem:[#allocation2 + $0xf2] sm:$0xff]
      %v945 = vld [vmem:[#allocation2 + $0xfa] sm:$0xff]
      %v946 = vld [vmem:[#allocation2 + $0x10a] sm:$0xff]
      %v947 = vld [vmem:[#allocation2 + $0x112] sm:$0xff]
      %v948 = vld [vmem:[#allocation2 + $0x122] sm:$0xff]
      %v949 = vld [vmem:[#allocation2 + $0x12a] sm:$0xff]
      %v950 = vld [vmem:[#allocation2 + $0x13a] sm:$0xff]
      %v951 = vld [vmem:[#allocation2 + $0x142] sm:$0xff]
      %v952 = vld [vmem:[#allocation2 + $0x152] sm:$0xff]
      %v953 = vld [vmem:[#allocation2 + $0x15a] sm:$0xff]
      %v954 = vld [vmem:[#allocation2 + $0x16a] sm:$0xff]
      %v955 = vld [vmem:[#allocation2 + $0x172] sm:$0xff]
      %s956 = scalar_lea.vmem %s3, 256
      %v957 = vld [vmem:[%s956] sm:$0xff]
      %v958 = vld [vmem:[%s956 + $0x8] sm:$0xff]
      %v959 = vld [vmem:[%s956 + $0x10] sm:$0xff]
      %v960 = vld [vmem:[%s956 + $0x18] sm:$0xff]
      %v961 = vld [vmem:[%s956 + $0x20] sm:$0xff]
      %v962 = vld [vmem:[%s956 + $0x28] sm:$0xff]
      %v963 = vld [vmem:[%s956 + $0x30] sm:$0xff]
      %v964 = vld [vmem:[%s956 + $0x38] sm:$0xff]
      %v965 = vld [vmem:[%s956 + $0x40] sm:$0xff]
      %v966 = vld [vmem:[%s956 + $0x48] sm:$0xff]
      %v967 = vld [vmem:[%s956 + $0x50] sm:$0xff]
      %v968 = vld [vmem:[%s956 + $0x58] sm:$0xff]
      %v969 = vld [vmem:[%s956 + $0x60] sm:$0xff]
      %v970 = vld [vmem:[%s956 + $0x68] sm:$0xff]
      %v971 = vld [vmem:[%s956 + $0x70] sm:$0xff]
      %v972 = vld [vmem:[%s956 + $0x78] sm:$0xff]
      %973 = vmatpush.msra.mxu0 %v972
      %974 = vmatpush.msra.mxu0 %v971
      %975 = vmatpush.msra.mxu0 %v970
      %976 = vmatpush.msra.mxu0 %v969
      %977 = vmatpush.msra.mxu0 %v968
      %978 = vmatpush.msra.mxu0 %v967
      %979 = vmatpush.msra.mxu0 %v966
      %980 = vmatpush.msra.mxu0 %v965
      %981 = vmatpush.msra.mxu0 %v964
      %982 = vmatpush.msra.mxu0 %v963
      %983 = vmatpush.msra.mxu0 %v962
      %984 = vmatpush.msra.mxu0 %v961
      %985 = vmatpush.msra.mxu0 %v960
      %986 = vmatpush.msra.mxu0 %v959
      %987 = vmatpush.msra.mxu0 %v958
      %988 = vmatpush.msra.mxu0 %v957
      %989 = vmatmul.f32.gmra.mxu0 %v924
      %v990 = vpop.f32.mrf.mxu0
      %v991 = vadd.f32 0.0, %v990
      %992 = vmatmul.f32.gmra.mxu0 %v925
      %v993 = vpop.f32.mrf.mxu0
      %v994 = vadd.f32 0.0, %v993
      %995 = vmatmul.f32.gmra.mxu0 %v926
      %v996 = vpop.f32.mrf.mxu0
      %v997 = vadd.f32 0.0, %v996
      %998 = vmatmul.f32.gmra.mxu0 %v927
      %v999 = vpop.f32.mrf.mxu0
      %v1000 = vadd.f32 0.0, %v999
      %1001 = vmatmul.f32.gmra.mxu0 %v928
      %v1002 = vpop.f32.mrf.mxu0
      %v1003 = vadd.f32 0.0, %v1002
      %1004 = vmatmul.f32.gmra.mxu0 %v929
      %v1005 = vpop.f32.mrf.mxu0
      %v1006 = vadd.f32 0.0, %v1005
      %1007 = vmatmul.f32.gmra.mxu0 %v930
      %v1008 = vpop.f32.mrf.mxu0
      %v1009 = vadd.f32 0.0, %v1008
      %1010 = vmatmul.f32.gmra.mxu0 %v931
      %v1011 = vpop.f32.mrf.mxu0
      %v1012 = vadd.f32 0.0, %v1011
      %1013 = vmatmul.f32.gmra.mxu0 %v932
      %v1014 = vpop.f32.mrf.mxu0
      %v1015 = vadd.f32 0.0, %v1014
      %1016 = vmatmul.f32.gmra.mxu0 %v933
      %v1017 = vpop.f32.mrf.mxu0
      %v1018 = vadd.f32 0.0, %v1017
      %1019 = vmatmul.f32.gmra.mxu0 %v934
      %v1020 = vpop.f32.mrf.mxu0
      %v1021 = vadd.f32 0.0, %v1020
      %1022 = vmatmul.f32.gmra.mxu0 %v935
      %v1023 = vpop.f32.mrf.mxu0
      %v1024 = vadd.f32 0.0, %v1023
      %1025 = vmatmul.f32.gmra.mxu0 %v936
      %v1026 = vpop.f32.mrf.mxu0
      %v1027 = vadd.f32 0.0, %v1026
      %1028 = vmatmul.f32.gmra.mxu0 %v937
      %v1029 = vpop.f32.mrf.mxu0
      %v1030 = vadd.f32 0.0, %v1029
      %1031 = vmatmul.f32.gmra.mxu0 %v938
      %v1032 = vpop.f32.mrf.mxu0
      %v1033 = vadd.f32 0.0, %v1032
      %1034 = vmatmul.f32.gmra.mxu0 %v939
      %v1035 = vpop.f32.mrf.mxu0
      %v1036 = vadd.f32 0.0, %v1035
      %1037 = vmatmul.f32.gmra.mxu0 %v940
      %v1038 = vpop.f32.mrf.mxu0
      %v1039 = vadd.f32 0.0, %v1038
      %1040 = vmatmul.f32.gmra.mxu0 %v941
      %v1041 = vpop.f32.mrf.mxu0
      %v1042 = vadd.f32 0.0, %v1041
      %1043 = vmatmul.f32.gmra.mxu0 %v942
      %v1044 = vpop.f32.mrf.mxu0
      %v1045 = vadd.f32 0.0, %v1044
      %1046 = vmatmul.f32.gmra.mxu0 %v943
      %v1047 = vpop.f32.mrf.mxu0
      %v1048 = vadd.f32 0.0, %v1047
      %1049 = vmatmul.f32.gmra.mxu0 %v944
      %v1050 = vpop.f32.mrf.mxu0
      %v1051 = vadd.f32 0.0, %v1050
      %1052 = vmatmul.f32.gmra.mxu0 %v945
      %v1053 = vpop.f32.mrf.mxu0
      %v1054 = vadd.f32 0.0, %v1053
      %1055 = vmatmul.f32.gmra.mxu0 %v946
      %v1056 = vpop.f32.mrf.mxu0
      %v1057 = vadd.f32 0.0, %v1056
      %1058 = vmatmul.f32.gmra.mxu0 %v947
      %v1059 = vpop.f32.mrf.mxu0
      %v1060 = vadd.f32 0.0, %v1059
      %1061 = vmatmul.f32.gmra.mxu0 %v948
      %v1062 = vpop.f32.mrf.mxu0
      %v1063 = vadd.f32 0.0, %v1062
      %1064 = vmatmul.f32.gmra.mxu0 %v949
      %v1065 = vpop.f32.mrf.mxu0
      %v1066 = vadd.f32 0.0, %v1065
      %1067 = vmatmul.f32.gmra.mxu0 %v950
      %v1068 = vpop.f32.mrf.mxu0
      %v1069 = vadd.f32 0.0, %v1068
      %1070 = vmatmul.f32.gmra.mxu0 %v951
      %v1071 = vpop.f32.mrf.mxu0
      %v1072 = vadd.f32 0.0, %v1071
      %1073 = vmatmul.f32.gmra.mxu0 %v952
      %v1074 = vpop.f32.mrf.mxu0
      %v1075 = vadd.f32 0.0, %v1074
      %1076 = vmatmul.f32.gmra.mxu0 %v953
      %v1077 = vpop.f32.mrf.mxu0
      %v1078 = vadd.f32 0.0, %v1077
      %1079 = vmatmul.f32.gmra.mxu0 %v954
      %v1080 = vpop.f32.mrf.mxu0
      %v1081 = vadd.f32 0.0, %v1080
      %1082 = vmatmul.f32.gmra.mxu0 %v955
      %v1083 = vpop.f32.mrf.mxu0
      %v1084 = vadd.f32 0.0, %v1083
      %1085 = vdwg.mxu0
      %v1086 = vadd.f32 %v829, %v991
      %v1087 = vadd.f32 %v832, %v994
      %v1088 = vadd.f32 %v835, %v997
      %v1089 = vadd.f32 %v838, %v1000
      %v1090 = vadd.f32 %v841, %v1003
      %v1091 = vadd.f32 %v844, %v1006
      %v1092 = vadd.f32 %v847, %v1009
      %v1093 = vadd.f32 %v850, %v1012
      %v1094 = vadd.f32 %v853, %v1015
      %v1095 = vadd.f32 %v856, %v1018
      %v1096 = vadd.f32 %v859, %v1021
      %v1097 = vadd.f32 %v862, %v1024
      %v1098 = vadd.f32 %v865, %v1027
      %v1099 = vadd.f32 %v868, %v1030
      %v1100 = vadd.f32 %v871, %v1033
      %v1101 = vadd.f32 %v874, %v1036
      %v1102 = vadd.f32 %v877, %v1039
      %v1103 = vadd.f32 %v880, %v1042
      %v1104 = vadd.f32 %v883, %v1045
      %v1105 = vadd.f32 %v886, %v1048
      %v1106 = vadd.f32 %v889, %v1051
      %v1107 = vadd.f32 %v892, %v1054
      %v1108 = vadd.f32 %v895, %v1057
      %v1109 = vadd.f32 %v898, %v1060
      %v1110 = vadd.f32 %v901, %v1063
      %v1111 = vadd.f32 %v904, %v1066
      %v1112 = vadd.f32 %v907, %v1069
      %v1113 = vadd.f32 %v910, %v1072
      %v1114 = vadd.f32 %v913, %v1075
      %v1115 = vadd.f32 %v916, %v1078
      %v1116 = vadd.f32 %v919, %v1081
      %v1117 = vadd.f32 %v922, %v1084
      %v1118 = vld [vmem:[%s568] sm:$0xff]
      %v1119 = vld [vmem:[%s568 + $0x8] sm:$0xff]
      %v1120 = vld [vmem:[%s568 + $0x18] sm:$0xff]
      %v1121 = vld [vmem:[%s568 + $0x20] sm:$0xff]
      %v1122 = vld [vmem:[%s568 + $0x30] sm:$0xff]
      %v1123 = vld [vmem:[%s568 + $0x38] sm:$0xff]
      %v1124 = vld [vmem:[%s568 + $0x48] sm:$0xff]
      %v1125 = vld [vmem:[%s568 + $0x50] sm:$0xff]
      %v1126 = vld [vmem:[%s568 + $0x60] sm:$0xff]
      %v1127 = vld [vmem:[%s568 + $0x68] sm:$0xff]
      %v1128 = vld [vmem:[%s568 + $0x78] sm:$0xff]
      %v1129 = vld [vmem:[%s568 + $0x80] sm:$0xff]
      %v1130 = vld [vmem:[%s568 + $0x90] sm:$0xff]
      %v1131 = vld [vmem:[%s568 + $0x98] sm:$0xff]
      %v1132 = vld [vmem:[%s568 + $0xa8] sm:$0xff]
      %v1133 = vld [vmem:[%s568 + $0xb0] sm:$0xff]
      %v1134 = vld [vmem:[%s568 + $0xc0] sm:$0xff]
      %v1135 = vld [vmem:[%s568 + $0xc8] sm:$0xff]
      %v1136 = vld [vmem:[%s568 + $0xd8] sm:$0xff]
      %v1137 = vld [vmem:[%s568 + $0xe0] sm:$0xff]
      %v1138 = vld [vmem:[%s568 + $0xf0] sm:$0xff]
      %v1139 = vld [vmem:[%s568 + $0xf8] sm:$0xff]
      %v1140 = vld [vmem:[%s568 + $0x108] sm:$0xff]
      %v1141 = vld [vmem:[%s568 + $0x110] sm:$0xff]
      %v1142 = vld [vmem:[%s568 + $0x120] sm:$0xff]
      %v1143 = vld [vmem:[%s568 + $0x128] sm:$0xff]
      %v1144 = vld [vmem:[%s568 + $0x138] sm:$0xff]
      %v1145 = vld [vmem:[%s568 + $0x140] sm:$0xff]
      %v1146 = vld [vmem:[%s568 + $0x150] sm:$0xff]
      %v1147 = vld [vmem:[%s568 + $0x158] sm:$0xff]
      %v1148 = vld [vmem:[%s568 + $0x168] sm:$0xff]
      %v1149 = vld [vmem:[%s568 + $0x170] sm:$0xff]
      %s1150 = scalar_lea.vmem %s3, 384
      %v1151 = vld [vmem:[%s1150] sm:$0xff]
      %v1152 = vld [vmem:[%s1150 + $0x8] sm:$0xff]
      %v1153 = vld [vmem:[%s1150 + $0x10] sm:$0xff]
      %v1154 = vld [vmem:[%s1150 + $0x18] sm:$0xff]
      %v1155 = vld [vmem:[%s1150 + $0x20] sm:$0xff]
      %v1156 = vld [vmem:[%s1150 + $0x28] sm:$0xff]
      %v1157 = vld [vmem:[%s1150 + $0x30] sm:$0xff]
      %v1158 = vld [vmem:[%s1150 + $0x38] sm:$0xff]
      %v1159 = vld [vmem:[%s1150 + $0x40] sm:$0xff]
      %v1160 = vld [vmem:[%s1150 + $0x48] sm:$0xff]
      %v1161 = vld [vmem:[%s1150 + $0x50] sm:$0xff]
      %v1162 = vld [vmem:[%s1150 + $0x58] sm:$0xff]
      %v1163 = vld [vmem:[%s1150 + $0x60] sm:$0xff]
      %v1164 = vld [vmem:[%s1150 + $0x68] sm:$0xff]
      %v1165 = vld [vmem:[%s1150 + $0x70] sm:$0xff]
      %v1166 = vld [vmem:[%s1150 + $0x78] sm:$0xff]
      %1167 = vmatpush.msra.mxu0 %v1166
      %1168 = vmatpush.msra.mxu0 %v1165
      %1169 = vmatpush.msra.mxu0 %v1164
      %1170 = vmatpush.msra.mxu0 %v1163
      %1171 = vmatpush.msra.mxu0 %v1162
      %1172 = vmatpush.msra.mxu0 %v1161
      %1173 = vmatpush.msra.mxu0 %v1160
      %1174 = vmatpush.msra.mxu0 %v1159
      %1175 = vmatpush.msra.mxu0 %v1158
      %1176 = vmatpush.msra.mxu0 %v1157
      %1177 = vmatpush.msra.mxu0 %v1156
      %1178 = vmatpush.msra.mxu0 %v1155
      %1179 = vmatpush.msra.mxu0 %v1154
      %1180 = vmatpush.msra.mxu0 %v1153
      %1181 = vmatpush.msra.mxu0 %v1152
      %1182 = vmatpush.msra.mxu0 %v1151
      %1183 = vmatmul.f32.gmra.mxu0 %v1118
      %v1184 = vpop.f32.mrf.mxu0
      %v1185 = vadd.f32 0.0, %v1184
      %1186 = vmatmul.f32.gmra.mxu0 %v1119
      %v1187 = vpop.f32.mrf.mxu0
      %v1188 = vadd.f32 0.0, %v1187
      %1189 = vmatmul.f32.gmra.mxu0 %v1120
      %v1190 = vpop.f32.mrf.mxu0
      %v1191 = vadd.f32 0.0, %v1190
      %1192 = vmatmul.f32.gmra.mxu0 %v1121
      %v1193 = vpop.f32.mrf.mxu0
      %v1194 = vadd.f32 0.0, %v1193
      %1195 = vmatmul.f32.gmra.mxu0 %v1122
      %v1196 = vpop.f32.mrf.mxu0
      %v1197 = vadd.f32 0.0, %v1196
      %1198 = vmatmul.f32.gmra.mxu0 %v1123
      %v1199 = vpop.f32.mrf.mxu0
      %v1200 = vadd.f32 0.0, %v1199
      %1201 = vmatmul.f32.gmra.mxu0 %v1124
      %v1202 = vpop.f32.mrf.mxu0
      %v1203 = vadd.f32 0.0, %v1202
      %1204 = vmatmul.f32.gmra.mxu0 %v1125
      %v1205 = vpop.f32.mrf.mxu0
      %v1206 = vadd.f32 0.0, %v1205
      %1207 = vmatmul.f32.gmra.mxu0 %v1126
      %v1208 = vpop.f32.mrf.mxu0
      %v1209 = vadd.f32 0.0, %v1208
      %1210 = vmatmul.f32.gmra.mxu0 %v1127
      %v1211 = vpop.f32.mrf.mxu0
      %v1212 = vadd.f32 0.0, %v1211
      %1213 = vmatmul.f32.gmra.mxu0 %v1128
      %v1214 = vpop.f32.mrf.mxu0
      %v1215 = vadd.f32 0.0, %v1214
      %1216 = vmatmul.f32.gmra.mxu0 %v1129
      %v1217 = vpop.f32.mrf.mxu0
      %v1218 = vadd.f32 0.0, %v1217
      %1219 = vmatmul.f32.gmra.mxu0 %v1130
      %v1220 = vpop.f32.mrf.mxu0
      %v1221 = vadd.f32 0.0, %v1220
      %1222 = vmatmul.f32.gmra.mxu0 %v1131
      %v1223 = vpop.f32.mrf.mxu0
      %v1224 = vadd.f32 0.0, %v1223
      %1225 = vmatmul.f32.gmra.mxu0 %v1132
      %v1226 = vpop.f32.mrf.mxu0
      %v1227 = vadd.f32 0.0, %v1226
      %1228 = vmatmul.f32.gmra.mxu0 %v1133
      %v1229 = vpop.f32.mrf.mxu0
      %v1230 = vadd.f32 0.0, %v1229
      %1231 = vmatmul.f32.gmra.mxu0 %v1134
      %v1232 = vpop.f32.mrf.mxu0
      %v1233 = vadd.f32 0.0, %v1232
      %1234 = vmatmul.f32.gmra.mxu0 %v1135
      %v1235 = vpop.f32.mrf.mxu0
      %v1236 = vadd.f32 0.0, %v1235
      %1237 = vmatmul.f32.gmra.mxu0 %v1136
      %v1238 = vpop.f32.mrf.mxu0
      %v1239 = vadd.f32 0.0, %v1238
      %1240 = vmatmul.f32.gmra.mxu0 %v1137
      %v1241 = vpop.f32.mrf.mxu0
      %v1242 = vadd.f32 0.0, %v1241
      %1243 = vmatmul.f32.gmra.mxu0 %v1138
      %v1244 = vpop.f32.mrf.mxu0
      %v1245 = vadd.f32 0.0, %v1244
      %1246 = vmatmul.f32.gmra.mxu0 %v1139
      %v1247 = vpop.f32.mrf.mxu0
      %v1248 = vadd.f32 0.0, %v1247
      %1249 = vmatmul.f32.gmra.mxu0 %v1140
      %v1250 = vpop.f32.mrf.mxu0
      %v1251 = vadd.f32 0.0, %v1250
      %1252 = vmatmul.f32.gmra.mxu0 %v1141
      %v1253 = vpop.f32.mrf.mxu0
      %v1254 = vadd.f32 0.0, %v1253
      %1255 = vmatmul.f32.gmra.mxu0 %v1142
      %v1256 = vpop.f32.mrf.mxu0
      %v1257 = vadd.f32 0.0, %v1256
      %1258 = vmatmul.f32.gmra.mxu0 %v1143
      %v1259 = vpop.f32.mrf.mxu0
      %v1260 = vadd.f32 0.0, %v1259
      %1261 = vmatmul.f32.gmra.mxu0 %v1144
      %v1262 = vpop.f32.mrf.mxu0
      %v1263 = vadd.f32 0.0, %v1262
      %1264 = vmatmul.f32.gmra.mxu0 %v1145
      %v1265 = vpop.f32.mrf.mxu0
      %v1266 = vadd.f32 0.0, %v1265
      %1267 = vmatmul.f32.gmra.mxu0 %v1146
      %v1268 = vpop.f32.mrf.mxu0
      %v1269 = vadd.f32 0.0, %v1268
      %1270 = vmatmul.f32.gmra.mxu0 %v1147
      %v1271 = vpop.f32.mrf.mxu0
      %v1272 = vadd.f32 0.0, %v1271
      %1273 = vmatmul.f32.gmra.mxu0 %v1148
      %v1274 = vpop.f32.mrf.mxu0
      %v1275 = vadd.f32 0.0, %v1274
      %1276 = vmatmul.f32.gmra.mxu0 %v1149
      %v1277 = vpop.f32.mrf.mxu0
      %v1278 = vadd.f32 0.0, %v1277
      %1279 = vdwg.mxu0
      %v1280 = vadd.f32 %v1086, %v1185
      %v1281 = vadd.f32 %v1087, %v1188
      %v1282 = vadd.f32 %v1088, %v1191
      %v1283 = vadd.f32 %v1089, %v1194
      %v1284 = vadd.f32 %v1090, %v1197
      %v1285 = vadd.f32 %v1091, %v1200
      %v1286 = vadd.f32 %v1092, %v1203
      %v1287 = vadd.f32 %v1093, %v1206
      %v1288 = vadd.f32 %v1094, %v1209
      %v1289 = vadd.f32 %v1095, %v1212
      %v1290 = vadd.f32 %v1096, %v1215
      %v1291 = vadd.f32 %v1097, %v1218
      %v1292 = vadd.f32 %v1098, %v1221
      %v1293 = vadd.f32 %v1099, %v1224
      %v1294 = vadd.f32 %v1100, %v1227
      %v1295 = vadd.f32 %v1101, %v1230
      %v1296 = vadd.f32 %v1102, %v1233
      %v1297 = vadd.f32 %v1103, %v1236
      %v1298 = vadd.f32 %v1104, %v1239
      %v1299 = vadd.f32 %v1105, %v1242
      %v1300 = vadd.f32 %v1106, %v1245
      %v1301 = vadd.f32 %v1107, %v1248
      %v1302 = vadd.f32 %v1108, %v1251
      %v1303 = vadd.f32 %v1109, %v1254
      %v1304 = vadd.f32 %v1110, %v1257
      %v1305 = vadd.f32 %v1111, %v1260
      %v1306 = vadd.f32 %v1112, %v1263
      %v1307 = vadd.f32 %v1113, %v1266
      %v1308 = vadd.f32 %v1114, %v1269
      %v1309 = vadd.f32 %v1115, %v1272
      %v1310 = vadd.f32 %v1116, %v1275
      %v1311 = vadd.f32 %v1117, %v1278
      %v1312 = vld [vmem:[%s568 + $0x1] sm:$0xff]
      %v1313 = vld [vmem:[%s568 + $0x9] sm:$0xff]
      %v1314 = vld [vmem:[%s568 + $0x19] sm:$0xff]
      %v1315 = vld [vmem:[%s568 + $0x21] sm:$0xff]
      %v1316 = vld [vmem:[%s568 + $0x31] sm:$0xff]
      %v1317 = vld [vmem:[%s568 + $0x39] sm:$0xff]
      %v1318 = vld [vmem:[%s568 + $0x49] sm:$0xff]
      %v1319 = vld [vmem:[%s568 + $0x51] sm:$0xff]
      %v1320 = vld [vmem:[%s568 + $0x61] sm:$0xff]
      %v1321 = vld [vmem:[%s568 + $0x69] sm:$0xff]
      %v1322 = vld [vmem:[%s568 + $0x79] sm:$0xff]
      %v1323 = vld [vmem:[%s568 + $0x81] sm:$0xff]
      %v1324 = vld [vmem:[%s568 + $0x91] sm:$0xff]
      %v1325 = vld [vmem:[%s568 + $0x99] sm:$0xff]
      %v1326 = vld [vmem:[%s568 + $0xa9] sm:$0xff]
      %v1327 = vld [vmem:[%s568 + $0xb1] sm:$0xff]
      %v1328 = vld [vmem:[%s568 + $0xc1] sm:$0xff]
      %v1329 = vld [vmem:[%s568 + $0xc9] sm:$0xff]
      %v1330 = vld [vmem:[%s568 + $0xd9] sm:$0xff]
      %v1331 = vld [vmem:[%s568 + $0xe1] sm:$0xff]
      %v1332 = vld [vmem:[%s568 + $0xf1] sm:$0xff]
      %v1333 = vld [vmem:[%s568 + $0xf9] sm:$0xff]
      %v1334 = vld [vmem:[%s568 + $0x109] sm:$0xff]
      %v1335 = vld [vmem:[%s568 + $0x111] sm:$0xff]
      %v1336 = vld [vmem:[%s568 + $0x121] sm:$0xff]
      %v1337 = vld [vmem:[%s568 + $0x129] sm:$0xff]
      %v1338 = vld [vmem:[%s568 + $0x139] sm:$0xff]
      %v1339 = vld [vmem:[%s568 + $0x141] sm:$0xff]
      %v1340 = vld [vmem:[%s568 + $0x151] sm:$0xff]
      %v1341 = vld [vmem:[%s568 + $0x159] sm:$0xff]
      %v1342 = vld [vmem:[%s568 + $0x169] sm:$0xff]
      %v1343 = vld [vmem:[%s568 + $0x171] sm:$0xff]
      %s1344 = scalar_lea.vmem %s3, 512
      %v1345 = vld [vmem:[%s1344] sm:$0xff]
      %v1346 = vld [vmem:[%s1344 + $0x8] sm:$0xff]
      %v1347 = vld [vmem:[%s1344 + $0x10] sm:$0xff]
      %v1348 = vld [vmem:[%s1344 + $0x18] sm:$0xff]
      %v1349 = vld [vmem:[%s1344 + $0x20] sm:$0xff]
      %v1350 = vld [vmem:[%s1344 + $0x28] sm:$0xff]
      %v1351 = vld [vmem:[%s1344 + $0x30] sm:$0xff]
      %v1352 = vld [vmem:[%s1344 + $0x38] sm:$0xff]
      %v1353 = vld [vmem:[%s1344 + $0x40] sm:$0xff]
      %v1354 = vld [vmem:[%s1344 + $0x48] sm:$0xff]
      %v1355 = vld [vmem:[%s1344 + $0x50] sm:$0xff]
      %v1356 = vld [vmem:[%s1344 + $0x58] sm:$0xff]
      %v1357 = vld [vmem:[%s1344 + $0x60] sm:$0xff]
      %v1358 = vld [vmem:[%s1344 + $0x68] sm:$0xff]
      %v1359 = vld [vmem:[%s1344 + $0x70] sm:$0xff]
      %v1360 = vld [vmem:[%s1344 + $0x78] sm:$0xff]
      %1361 = vmatpush.msra.mxu0 %v1360
      %1362 = vmatpush.msra.mxu0 %v1359
      %1363 = vmatpush.msra.mxu0 %v1358
      %1364 = vmatpush.msra.mxu0 %v1357
      %1365 = vmatpush.msra.mxu0 %v1356
      %1366 = vmatpush.msra.mxu0 %v1355
      %1367 = vmatpush.msra.mxu0 %v1354
      %1368 = vmatpush.msra.mxu0 %v1353
      %1369 = vmatpush.msra.mxu0 %v1352
      %1370 = vmatpush.msra.mxu0 %v1351
      %1371 = vmatpush.msra.mxu0 %v1350
      %1372 = vmatpush.msra.mxu0 %v1349
      %1373 = vmatpush.msra.mxu0 %v1348
      %1374 = vmatpush.msra.mxu0 %v1347
      %1375 = vmatpush.msra.mxu0 %v1346
      %1376 = vmatpush.msra.mxu0 %v1345
      %1377 = vmatmul.f32.gmra.mxu0 %v1312
      %v1378 = vpop.f32.mrf.mxu0
      %v1379 = vadd.f32 0.0, %v1378
      %1380 = vmatmul.f32.gmra.mxu0 %v1313
      %v1381 = vpop.f32.mrf.mxu0
      %v1382 = vadd.f32 0.0, %v1381
      %1383 = vmatmul.f32.gmra.mxu0 %v1314
      %v1384 = vpop.f32.mrf.mxu0
      %v1385 = vadd.f32 0.0, %v1384
      %1386 = vmatmul.f32.gmra.mxu0 %v1315
      %v1387 = vpop.f32.mrf.mxu0
      %v1388 = vadd.f32 0.0, %v1387
      %1389 = vmatmul.f32.gmra.mxu0 %v1316
      %v1390 = vpop.f32.mrf.mxu0
      %v1391 = vadd.f32 0.0, %v1390
      %1392 = vmatmul.f32.gmra.mxu0 %v1317
      %v1393 = vpop.f32.mrf.mxu0
      %v1394 = vadd.f32 0.0, %v1393
      %1395 = vmatmul.f32.gmra.mxu0 %v1318
      %v1396 = vpop.f32.mrf.mxu0
      %v1397 = vadd.f32 0.0, %v1396
      %1398 = vmatmul.f32.gmra.mxu0 %v1319
      %v1399 = vpop.f32.mrf.mxu0
      %v1400 = vadd.f32 0.0, %v1399
      %1401 = vmatmul.f32.gmra.mxu0 %v1320
      %v1402 = vpop.f32.mrf.mxu0
      %v1403 = vadd.f32 0.0, %v1402
      %1404 = vmatmul.f32.gmra.mxu0 %v1321
      %v1405 = vpop.f32.mrf.mxu0
      %v1406 = vadd.f32 0.0, %v1405
      %1407 = vmatmul.f32.gmra.mxu0 %v1322
      %v1408 = vpop.f32.mrf.mxu0
      %v1409 = vadd.f32 0.0, %v1408
      %1410 = vmatmul.f32.gmra.mxu0 %v1323
      %v1411 = vpop.f32.mrf.mxu0
      %v1412 = vadd.f32 0.0, %v1411
      %1413 = vmatmul.f32.gmra.mxu0 %v1324
      %v1414 = vpop.f32.mrf.mxu0
      %v1415 = vadd.f32 0.0, %v1414
      %1416 = vmatmul.f32.gmra.mxu0 %v1325
      %v1417 = vpop.f32.mrf.mxu0
      %v1418 = vadd.f32 0.0, %v1417
      %1419 = vmatmul.f32.gmra.mxu0 %v1326
      %v1420 = vpop.f32.mrf.mxu0
      %v1421 = vadd.f32 0.0, %v1420
      %1422 = vmatmul.f32.gmra.mxu0 %v1327
      %v1423 = vpop.f32.mrf.mxu0
      %v1424 = vadd.f32 0.0, %v1423
      %1425 = vmatmul.f32.gmra.mxu0 %v1328
      %v1426 = vpop.f32.mrf.mxu0
      %v1427 = vadd.f32 0.0, %v1426
      %1428 = vmatmul.f32.gmra.mxu0 %v1329
      %v1429 = vpop.f32.mrf.mxu0
      %v1430 = vadd.f32 0.0, %v1429
      %1431 = vmatmul.f32.gmra.mxu0 %v1330
      %v1432 = vpop.f32.mrf.mxu0
      %v1433 = vadd.f32 0.0, %v1432
      %1434 = vmatmul.f32.gmra.mxu0 %v1331
      %v1435 = vpop.f32.mrf.mxu0
      %v1436 = vadd.f32 0.0, %v1435
      %1437 = vmatmul.f32.gmra.mxu0 %v1332
      %v1438 = vpop.f32.mrf.mxu0
      %v1439 = vadd.f32 0.0, %v1438
      %1440 = vmatmul.f32.gmra.mxu0 %v1333
      %v1441 = vpop.f32.mrf.mxu0
      %v1442 = vadd.f32 0.0, %v1441
      %1443 = vmatmul.f32.gmra.mxu0 %v1334
      %v1444 = vpop.f32.mrf.mxu0
      %v1445 = vadd.f32 0.0, %v1444
      %1446 = vmatmul.f32.gmra.mxu0 %v1335
      %v1447 = vpop.f32.mrf.mxu0
      %v1448 = vadd.f32 0.0, %v1447
      %1449 = vmatmul.f32.gmra.mxu0 %v1336
      %v1450 = vpop.f32.mrf.mxu0
      %v1451 = vadd.f32 0.0, %v1450
      %1452 = vmatmul.f32.gmra.mxu0 %v1337
      %v1453 = vpop.f32.mrf.mxu0
      %v1454 = vadd.f32 0.0, %v1453
      %1455 = vmatmul.f32.gmra.mxu0 %v1338
      %v1456 = vpop.f32.mrf.mxu0
      %v1457 = vadd.f32 0.0, %v1456
      %1458 = vmatmul.f32.gmra.mxu0 %v1339
      %v1459 = vpop.f32.mrf.mxu0
      %v1460 = vadd.f32 0.0, %v1459
      %1461 = vmatmul.f32.gmra.mxu0 %v1340
      %v1462 = vpop.f32.mrf.mxu0
      %v1463 = vadd.f32 0.0, %v1462
      %1464 = vmatmul.f32.gmra.mxu0 %v1341
      %v1465 = vpop.f32.mrf.mxu0
      %v1466 = vadd.f32 0.0, %v1465
      %1467 = vmatmul.f32.gmra.mxu0 %v1342
      %v1468 = vpop.f32.mrf.mxu0
      %v1469 = vadd.f32 0.0, %v1468
      %1470 = vmatmul.f32.gmra.mxu0 %v1343
      %v1471 = vpop.f32.mrf.mxu0
      %v1472 = vadd.f32 0.0, %v1471
      %1473 = vdwg.mxu0
      %v1474 = vadd.f32 %v1280, %v1379
      %v1475 = vadd.f32 %v1281, %v1382
      %v1476 = vadd.f32 %v1282, %v1385
      %v1477 = vadd.f32 %v1283, %v1388
      %v1478 = vadd.f32 %v1284, %v1391
      %v1479 = vadd.f32 %v1285, %v1394
      %v1480 = vadd.f32 %v1286, %v1397
      %v1481 = vadd.f32 %v1287, %v1400
      %v1482 = vadd.f32 %v1288, %v1403
      %v1483 = vadd.f32 %v1289, %v1406
      %v1484 = vadd.f32 %v1290, %v1409
      %v1485 = vadd.f32 %v1291, %v1412
      %v1486 = vadd.f32 %v1292, %v1415
      %v1487 = vadd.f32 %v1293, %v1418
      %v1488 = vadd.f32 %v1294, %v1421
      %v1489 = vadd.f32 %v1295, %v1424
      %v1490 = vadd.f32 %v1296, %v1427
      %v1491 = vadd.f32 %v1297, %v1430
      %v1492 = vadd.f32 %v1298, %v1433
      %v1493 = vadd.f32 %v1299, %v1436
      %v1494 = vadd.f32 %v1300, %v1439
      %v1495 = vadd.f32 %v1301, %v1442
      %v1496 = vadd.f32 %v1302, %v1445
      %v1497 = vadd.f32 %v1303, %v1448
      %v1498 = vadd.f32 %v1304, %v1451
      %v1499 = vadd.f32 %v1305, %v1454
      %v1500 = vadd.f32 %v1306, %v1457
      %v1501 = vadd.f32 %v1307, %v1460
      %v1502 = vadd.f32 %v1308, %v1463
      %v1503 = vadd.f32 %v1309, %v1466
      %v1504 = vadd.f32 %v1310, %v1469
      %v1505 = vadd.f32 %v1311, %v1472
      %v1506 = vld [vmem:[%s568 + $0x2] sm:$0xff]
      %v1507 = vld [vmem:[%s568 + $0xa] sm:$0xff]
      %v1508 = vld [vmem:[%s568 + $0x1a] sm:$0xff]
      %v1509 = vld [vmem:[%s568 + $0x22] sm:$0xff]
      %v1510 = vld [vmem:[%s568 + $0x32] sm:$0xff]
      %v1511 = vld [vmem:[%s568 + $0x3a] sm:$0xff]
      %v1512 = vld [vmem:[%s568 + $0x4a] sm:$0xff]
      %v1513 = vld [vmem:[%s568 + $0x52] sm:$0xff]
      %v1514 = vld [vmem:[%s568 + $0x62] sm:$0xff]
      %v1515 = vld [vmem:[%s568 + $0x6a] sm:$0xff]
      %v1516 = vld [vmem:[%s568 + $0x7a] sm:$0xff]
      %v1517 = vld [vmem:[%s568 + $0x82] sm:$0xff]
      %v1518 = vld [vmem:[%s568 + $0x92] sm:$0xff]
      %v1519 = vld [vmem:[%s568 + $0x9a] sm:$0xff]
      %v1520 = vld [vmem:[%s568 + $0xaa] sm:$0xff]
      %v1521 = vld [vmem:[%s568 + $0xb2] sm:$0xff]
      %v1522 = vld [vmem:[%s568 + $0xc2] sm:$0xff]
      %v1523 = vld [vmem:[%s568 + $0xca] sm:$0xff]
      %v1524 = vld [vmem:[%s568 + $0xda] sm:$0xff]
      %v1525 = vld [vmem:[%s568 + $0xe2] sm:$0xff]
      %v1526 = vld [vmem:[%s568 + $0xf2] sm:$0xff]
      %v1527 = vld [vmem:[%s568 + $0xfa] sm:$0xff]
      %v1528 = vld [vmem:[%s568 + $0x10a] sm:$0xff]
      %v1529 = vld [vmem:[%s568 + $0x112] sm:$0xff]
      %v1530 = vld [vmem:[%s568 + $0x122] sm:$0xff]
      %v1531 = vld [vmem:[%s568 + $0x12a] sm:$0xff]
      %v1532 = vld [vmem:[%s568 + $0x13a] sm:$0xff]
      %v1533 = vld [vmem:[%s568 + $0x142] sm:$0xff]
      %v1534 = vld [vmem:[%s568 + $0x152] sm:$0xff]
      %v1535 = vld [vmem:[%s568 + $0x15a] sm:$0xff]
      %v1536 = vld [vmem:[%s568 + $0x16a] sm:$0xff]
      %v1537 = vld [vmem:[%s568 + $0x172] sm:$0xff]
      %s1538 = scalar_lea.vmem %s3, 640
      %v1539 = vld [vmem:[%s1538] sm:$0xff]
      %v1540 = vld [vmem:[%s1538 + $0x8] sm:$0xff]
      %v1541 = vld [vmem:[%s1538 + $0x10] sm:$0xff]
      %v1542 = vld [vmem:[%s1538 + $0x18] sm:$0xff]
      %v1543 = vld [vmem:[%s1538 + $0x20] sm:$0xff]
      %v1544 = vld [vmem:[%s1538 + $0x28] sm:$0xff]
      %v1545 = vld [vmem:[%s1538 + $0x30] sm:$0xff]
      %v1546 = vld [vmem:[%s1538 + $0x38] sm:$0xff]
      %v1547 = vld [vmem:[%s1538 + $0x40] sm:$0xff]
      %v1548 = vld [vmem:[%s1538 + $0x48] sm:$0xff]
      %v1549 = vld [vmem:[%s1538 + $0x50] sm:$0xff]
      %v1550 = vld [vmem:[%s1538 + $0x58] sm:$0xff]
      %v1551 = vld [vmem:[%s1538 + $0x60] sm:$0xff]
      %v1552 = vld [vmem:[%s1538 + $0x68] sm:$0xff]
      %v1553 = vld [vmem:[%s1538 + $0x70] sm:$0xff]
      %v1554 = vld [vmem:[%s1538 + $0x78] sm:$0xff]
      %1555 = vmatpush.msra.mxu0 %v1554
      %1556 = vmatpush.msra.mxu0 %v1553
      %1557 = vmatpush.msra.mxu0 %v1552
      %1558 = vmatpush.msra.mxu0 %v1551
      %1559 = vmatpush.msra.mxu0 %v1550
      %1560 = vmatpush.msra.mxu0 %v1549
      %1561 = vmatpush.msra.mxu0 %v1548
      %1562 = vmatpush.msra.mxu0 %v1547
      %1563 = vmatpush.msra.mxu0 %v1546
      %1564 = vmatpush.msra.mxu0 %v1545
      %1565 = vmatpush.msra.mxu0 %v1544
      %1566 = vmatpush.msra.mxu0 %v1543
      %1567 = vmatpush.msra.mxu0 %v1542
      %1568 = vmatpush.msra.mxu0 %v1541
      %1569 = vmatpush.msra.mxu0 %v1540
      %1570 = vmatpush.msra.mxu0 %v1539
      %1571 = vmatmul.f32.gmra.mxu0 %v1506
      %v1572 = vpop.f32.mrf.mxu0
      %v1573 = vadd.f32 0.0, %v1572
      %1574 = vmatmul.f32.gmra.mxu0 %v1507
      %v1575 = vpop.f32.mrf.mxu0
      %v1576 = vadd.f32 0.0, %v1575
      %1577 = vmatmul.f32.gmra.mxu0 %v1508
      %v1578 = vpop.f32.mrf.mxu0
      %v1579 = vadd.f32 0.0, %v1578
      %1580 = vmatmul.f32.gmra.mxu0 %v1509
      %v1581 = vpop.f32.mrf.mxu0
      %v1582 = vadd.f32 0.0, %v1581
      %1583 = vmatmul.f32.gmra.mxu0 %v1510
      %v1584 = vpop.f32.mrf.mxu0
      %v1585 = vadd.f32 0.0, %v1584
      %1586 = vmatmul.f32.gmra.mxu0 %v1511
      %v1587 = vpop.f32.mrf.mxu0
      %v1588 = vadd.f32 0.0, %v1587
      %1589 = vmatmul.f32.gmra.mxu0 %v1512
      %v1590 = vpop.f32.mrf.mxu0
      %v1591 = vadd.f32 0.0, %v1590
      %1592 = vmatmul.f32.gmra.mxu0 %v1513
      %v1593 = vpop.f32.mrf.mxu0
      %v1594 = vadd.f32 0.0, %v1593
      %1595 = vmatmul.f32.gmra.mxu0 %v1514
      %v1596 = vpop.f32.mrf.mxu0
      %v1597 = vadd.f32 0.0, %v1596
      %1598 = vmatmul.f32.gmra.mxu0 %v1515
      %v1599 = vpop.f32.mrf.mxu0
      %v1600 = vadd.f32 0.0, %v1599
      %1601 = vmatmul.f32.gmra.mxu0 %v1516
      %v1602 = vpop.f32.mrf.mxu0
      %v1603 = vadd.f32 0.0, %v1602
      %1604 = vmatmul.f32.gmra.mxu0 %v1517
      %v1605 = vpop.f32.mrf.mxu0
      %v1606 = vadd.f32 0.0, %v1605
      %1607 = vmatmul.f32.gmra.mxu0 %v1518
      %v1608 = vpop.f32.mrf.mxu0
      %v1609 = vadd.f32 0.0, %v1608
      %1610 = vmatmul.f32.gmra.mxu0 %v1519
      %v1611 = vpop.f32.mrf.mxu0
      %v1612 = vadd.f32 0.0, %v1611
      %1613 = vmatmul.f32.gmra.mxu0 %v1520
      %v1614 = vpop.f32.mrf.mxu0
      %v1615 = vadd.f32 0.0, %v1614
      %1616 = vmatmul.f32.gmra.mxu0 %v1521
      %v1617 = vpop.f32.mrf.mxu0
      %v1618 = vadd.f32 0.0, %v1617
      %1619 = vmatmul.f32.gmra.mxu0 %v1522
      %v1620 = vpop.f32.mrf.mxu0
      %v1621 = vadd.f32 0.0, %v1620
      %1622 = vmatmul.f32.gmra.mxu0 %v1523
      %v1623 = vpop.f32.mrf.mxu0
      %v1624 = vadd.f32 0.0, %v1623
      %1625 = vmatmul.f32.gmra.mxu0 %v1524
      %v1626 = vpop.f32.mrf.mxu0
      %v1627 = vadd.f32 0.0, %v1626
      %1628 = vmatmul.f32.gmra.mxu0 %v1525
      %v1629 = vpop.f32.mrf.mxu0
      %v1630 = vadd.f32 0.0, %v1629
      %1631 = vmatmul.f32.gmra.mxu0 %v1526
      %v1632 = vpop.f32.mrf.mxu0
      %v1633 = vadd.f32 0.0, %v1632
      %1634 = vmatmul.f32.gmra.mxu0 %v1527
      %v1635 = vpop.f32.mrf.mxu0
      %v1636 = vadd.f32 0.0, %v1635
      %1637 = vmatmul.f32.gmra.mxu0 %v1528
      %v1638 = vpop.f32.mrf.mxu0
      %v1639 = vadd.f32 0.0, %v1638
      %1640 = vmatmul.f32.gmra.mxu0 %v1529
      %v1641 = vpop.f32.mrf.mxu0
      %v1642 = vadd.f32 0.0, %v1641
      %1643 = vmatmul.f32.gmra.mxu0 %v1530
      %v1644 = vpop.f32.mrf.mxu0
      %v1645 = vadd.f32 0.0, %v1644
      %1646 = vmatmul.f32.gmra.mxu0 %v1531
      %v1647 = vpop.f32.mrf.mxu0
      %v1648 = vadd.f32 0.0, %v1647
      %1649 = vmatmul.f32.gmra.mxu0 %v1532
      %v1650 = vpop.f32.mrf.mxu0
      %v1651 = vadd.f32 0.0, %v1650
      %1652 = vmatmul.f32.gmra.mxu0 %v1533
      %v1653 = vpop.f32.mrf.mxu0
      %v1654 = vadd.f32 0.0, %v1653
      %1655 = vmatmul.f32.gmra.mxu0 %v1534
      %v1656 = vpop.f32.mrf.mxu0
      %v1657 = vadd.f32 0.0, %v1656
      %1658 = vmatmul.f32.gmra.mxu0 %v1535
      %v1659 = vpop.f32.mrf.mxu0
      %v1660 = vadd.f32 0.0, %v1659
      %1661 = vmatmul.f32.gmra.mxu0 %v1536
      %v1662 = vpop.f32.mrf.mxu0
      %v1663 = vadd.f32 0.0, %v1662
      %1664 = vmatmul.f32.gmra.mxu0 %v1537
      %v1665 = vpop.f32.mrf.mxu0
      %v1666 = vadd.f32 0.0, %v1665
      %1667 = vdwg.mxu0
      %v1668 = vadd.f32 %v1474, %v1573
      %v1669 = vadd.f32 %v1475, %v1576
      %v1670 = vadd.f32 %v1476, %v1579
      %v1671 = vadd.f32 %v1477, %v1582
      %v1672 = vadd.f32 %v1478, %v1585
      %v1673 = vadd.f32 %v1479, %v1588
      %v1674 = vadd.f32 %v1480, %v1591
      %v1675 = vadd.f32 %v1481, %v1594
      %v1676 = vadd.f32 %v1482, %v1597
      %v1677 = vadd.f32 %v1483, %v1600
      %v1678 = vadd.f32 %v1484, %v1603
      %v1679 = vadd.f32 %v1485, %v1606
      %v1680 = vadd.f32 %v1486, %v1609
      %v1681 = vadd.f32 %v1487, %v1612
      %v1682 = vadd.f32 %v1488, %v1615
      %v1683 = vadd.f32 %v1489, %v1618
      %v1684 = vadd.f32 %v1490, %v1621
      %v1685 = vadd.f32 %v1491, %v1624
      %v1686 = vadd.f32 %v1492, %v1627
      %v1687 = vadd.f32 %v1493, %v1630
      %v1688 = vadd.f32 %v1494, %v1633
      %v1689 = vadd.f32 %v1495, %v1636
      %v1690 = vadd.f32 %v1496, %v1639
      %v1691 = vadd.f32 %v1497, %v1642
      %v1692 = vadd.f32 %v1498, %v1645
      %v1693 = vadd.f32 %v1499, %v1648
      %v1694 = vadd.f32 %v1500, %v1651
      %v1695 = vadd.f32 %v1501, %v1654
      %v1696 = vadd.f32 %v1502, %v1657
      %v1697 = vadd.f32 %v1503, %v1660
      %v1698 = vadd.f32 %v1504, %v1663
      %v1699 = vadd.f32 %v1505, %v1666
      %s1700 = scalar_lea.vmem [#allocation2], 48
      %v1701 = vld [vmem:[%s1700] sm:$0xff]
      %v1702 = vld [vmem:[%s1700 + $0x8] sm:$0xff]
      %v1703 = vld [vmem:[%s1700 + $0x18] sm:$0xff]
      %v1704 = vld [vmem:[%s1700 + $0x20] sm:$0xff]
      %v1705 = vld [vmem:[%s1700 + $0x30] sm:$0xff]
      %v1706 = vld [vmem:[%s1700 + $0x38] sm:$0xff]
      %v1707 = vld [vmem:[%s1700 + $0x48] sm:$0xff]
      %v1708 = vld [vmem:[%s1700 + $0x50] sm:$0xff]
      %v1709 = vld [vmem:[%s1700 + $0x60] sm:$0xff]
      %v1710 = vld [vmem:[%s1700 + $0x68] sm:$0xff]
      %v1711 = vld [vmem:[%s1700 + $0x78] sm:$0xff]
      %v1712 = vld [vmem:[%s1700 + $0x80] sm:$0xff]
      %v1713 = vld [vmem:[%s1700 + $0x90] sm:$0xff]
      %v1714 = vld [vmem:[%s1700 + $0x98] sm:$0xff]
      %v1715 = vld [vmem:[%s1700 + $0xa8] sm:$0xff]
      %v1716 = vld [vmem:[%s1700 + $0xb0] sm:$0xff]
      %v1717 = vld [vmem:[%s1700 + $0xc0] sm:$0xff]
      %v1718 = vld [vmem:[%s1700 + $0xc8] sm:$0xff]
      %v1719 = vld [vmem:[%s1700 + $0xd8] sm:$0xff]
      %v1720 = vld [vmem:[%s1700 + $0xe0] sm:$0xff]
      %v1721 = vld [vmem:[%s1700 + $0xf0] sm:$0xff]
      %v1722 = vld [vmem:[%s1700 + $0xf8] sm:$0xff]
      %v1723 = vld [vmem:[%s1700 + $0x108] sm:$0xff]
      %v1724 = vld [vmem:[%s1700 + $0x110] sm:$0xff]
      %v1725 = vld [vmem:[%s1700 + $0x120] sm:$0xff]
      %v1726 = vld [vmem:[%s1700 + $0x128] sm:$0xff]
      %v1727 = vld [vmem:[%s1700 + $0x138] sm:$0xff]
      %v1728 = vld [vmem:[%s1700 + $0x140] sm:$0xff]
      %v1729 = vld [vmem:[%s1700 + $0x150] sm:$0xff]
      %v1730 = vld [vmem:[%s1700 + $0x158] sm:$0xff]
      %v1731 = vld [vmem:[%s1700 + $0x168] sm:$0xff]
      %v1732 = vld [vmem:[%s1700 + $0x170] sm:$0xff]
      %s1733 = scalar_lea.vmem %s3, 768
      %v1734 = vld [vmem:[%s1733] sm:$0xff]
      %v1735 = vld [vmem:[%s1733 + $0x8] sm:$0xff]
      %v1736 = vld [vmem:[%s1733 + $0x10] sm:$0xff]
      %v1737 = vld [vmem:[%s1733 + $0x18] sm:$0xff]
      %v1738 = vld [vmem:[%s1733 + $0x20] sm:$0xff]
      %v1739 = vld [vmem:[%s1733 + $0x28] sm:$0xff]
      %v1740 = vld [vmem:[%s1733 + $0x30] sm:$0xff]
      %v1741 = vld [vmem:[%s1733 + $0x38] sm:$0xff]
      %v1742 = vld [vmem:[%s1733 + $0x40] sm:$0xff]
      %v1743 = vld [vmem:[%s1733 + $0x48] sm:$0xff]
      %v1744 = vld [vmem:[%s1733 + $0x50] sm:$0xff]
      %v1745 = vld [vmem:[%s1733 + $0x58] sm:$0xff]
      %v1746 = vld [vmem:[%s1733 + $0x60] sm:$0xff]
      %v1747 = vld [vmem:[%s1733 + $0x68] sm:$0xff]
      %v1748 = vld [vmem:[%s1733 + $0x70] sm:$0xff]
      %v1749 = vld [vmem:[%s1733 + $0x78] sm:$0xff]
      %1750 = vmatpush.msra.mxu0 %v1749
      %1751 = vmatpush.msra.mxu0 %v1748
      %1752 = vmatpush.msra.mxu0 %v1747
      %1753 = vmatpush.msra.mxu0 %v1746
      %1754 = vmatpush.msra.mxu0 %v1745
      %1755 = vmatpush.msra.mxu0 %v1744
      %1756 = vmatpush.msra.mxu0 %v1743
      %1757 = vmatpush.msra.mxu0 %v1742
      %1758 = vmatpush.msra.mxu0 %v1741
      %1759 = vmatpush.msra.mxu0 %v1740
      %1760 = vmatpush.msra.mxu0 %v1739
      %1761 = vmatpush.msra.mxu0 %v1738
      %1762 = vmatpush.msra.mxu0 %v1737
      %1763 = vmatpush.msra.mxu0 %v1736
      %1764 = vmatpush.msra.mxu0 %v1735
      %1765 = vmatpush.msra.mxu0 %v1734
      %1766 = vmatmul.f32.gmra.mxu0 %v1701
      %v1767 = vpop.f32.mrf.mxu0
      %v1768 = vadd.f32 0.0, %v1767
      %1769 = vmatmul.f32.gmra.mxu0 %v1702
      %v1770 = vpop.f32.mrf.mxu0
      %v1771 = vadd.f32 0.0, %v1770
      %1772 = vmatmul.f32.gmra.mxu0 %v1703
      %v1773 = vpop.f32.mrf.mxu0
      %v1774 = vadd.f32 0.0, %v1773
      %1775 = vmatmul.f32.gmra.mxu0 %v1704
      %v1776 = vpop.f32.mrf.mxu0
      %v1777 = vadd.f32 0.0, %v1776
      %1778 = vmatmul.f32.gmra.mxu0 %v1705
      %v1779 = vpop.f32.mrf.mxu0
      %v1780 = vadd.f32 0.0, %v1779
      %1781 = vmatmul.f32.gmra.mxu0 %v1706
      %v1782 = vpop.f32.mrf.mxu0
      %v1783 = vadd.f32 0.0, %v1782
      %1784 = vmatmul.f32.gmra.mxu0 %v1707
      %v1785 = vpop.f32.mrf.mxu0
      %v1786 = vadd.f32 0.0, %v1785
      %1787 = vmatmul.f32.gmra.mxu0 %v1708
      %v1788 = vpop.f32.mrf.mxu0
      %v1789 = vadd.f32 0.0, %v1788
      %1790 = vmatmul.f32.gmra.mxu0 %v1709
      %v1791 = vpop.f32.mrf.mxu0
      %v1792 = vadd.f32 0.0, %v1791
      %1793 = vmatmul.f32.gmra.mxu0 %v1710
      %v1794 = vpop.f32.mrf.mxu0
      %v1795 = vadd.f32 0.0, %v1794
      %1796 = vmatmul.f32.gmra.mxu0 %v1711
      %v1797 = vpop.f32.mrf.mxu0
      %v1798 = vadd.f32 0.0, %v1797
      %1799 = vmatmul.f32.gmra.mxu0 %v1712
      %v1800 = vpop.f32.mrf.mxu0
      %v1801 = vadd.f32 0.0, %v1800
      %1802 = vmatmul.f32.gmra.mxu0 %v1713
      %v1803 = vpop.f32.mrf.mxu0
      %v1804 = vadd.f32 0.0, %v1803
      %1805 = vmatmul.f32.gmra.mxu0 %v1714
      %v1806 = vpop.f32.mrf.mxu0
      %v1807 = vadd.f32 0.0, %v1806
      %1808 = vmatmul.f32.gmra.mxu0 %v1715
      %v1809 = vpop.f32.mrf.mxu0
      %v1810 = vadd.f32 0.0, %v1809
      %1811 = vmatmul.f32.gmra.mxu0 %v1716
      %v1812 = vpop.f32.mrf.mxu0
      %v1813 = vadd.f32 0.0, %v1812
      %1814 = vmatmul.f32.gmra.mxu0 %v1717
      %v1815 = vpop.f32.mrf.mxu0
      %v1816 = vadd.f32 0.0, %v1815
      %1817 = vmatmul.f32.gmra.mxu0 %v1718
      %v1818 = vpop.f32.mrf.mxu0
      %v1819 = vadd.f32 0.0, %v1818
      %1820 = vmatmul.f32.gmra.mxu0 %v1719
      %v1821 = vpop.f32.mrf.mxu0
      %v1822 = vadd.f32 0.0, %v1821
      %1823 = vmatmul.f32.gmra.mxu0 %v1720
      %v1824 = vpop.f32.mrf.mxu0
      %v1825 = vadd.f32 0.0, %v1824
      %1826 = vmatmul.f32.gmra.mxu0 %v1721
      %v1827 = vpop.f32.mrf.mxu0
      %v1828 = vadd.f32 0.0, %v1827
      %1829 = vmatmul.f32.gmra.mxu0 %v1722
      %v1830 = vpop.f32.mrf.mxu0
      %v1831 = vadd.f32 0.0, %v1830
      %1832 = vmatmul.f32.gmra.mxu0 %v1723
      %v1833 = vpop.f32.mrf.mxu0
      %v1834 = vadd.f32 0.0, %v1833
      %1835 = vmatmul.f32.gmra.mxu0 %v1724
      %v1836 = vpop.f32.mrf.mxu0
      %v1837 = vadd.f32 0.0, %v1836
      %1838 = vmatmul.f32.gmra.mxu0 %v1725
      %v1839 = vpop.f32.mrf.mxu0
      %v1840 = vadd.f32 0.0, %v1839
      %1841 = vmatmul.f32.gmra.mxu0 %v1726
      %v1842 = vpop.f32.mrf.mxu0
      %v1843 = vadd.f32 0.0, %v1842
      %1844 = vmatmul.f32.gmra.mxu0 %v1727
      %v1845 = vpop.f32.mrf.mxu0
      %v1846 = vadd.f32 0.0, %v1845
      %1847 = vmatmul.f32.gmra.mxu0 %v1728
      %v1848 = vpop.f32.mrf.mxu0
      %v1849 = vadd.f32 0.0, %v1848
      %1850 = vmatmul.f32.gmra.mxu0 %v1729
      %v1851 = vpop.f32.mrf.mxu0
      %v1852 = vadd.f32 0.0, %v1851
      %1853 = vmatmul.f32.gmra.mxu0 %v1730
      %v1854 = vpop.f32.mrf.mxu0
      %v1855 = vadd.f32 0.0, %v1854
      %1856 = vmatmul.f32.gmra.mxu0 %v1731
      %v1857 = vpop.f32.mrf.mxu0
      %v1858 = vadd.f32 0.0, %v1857
      %1859 = vmatmul.f32.gmra.mxu0 %v1732
      %v1860 = vpop.f32.mrf.mxu0
      %v1861 = vadd.f32 0.0, %v1860
      %1862 = vdwg.mxu0
      %v1863 = vadd.f32 %v1668, %v1768
      %v1864 = vadd.f32 %v1669, %v1771
      %v1865 = vadd.f32 %v1670, %v1774
      %v1866 = vadd.f32 %v1671, %v1777
      %v1867 = vadd.f32 %v1672, %v1780
      %v1868 = vadd.f32 %v1673, %v1783
      %v1869 = vadd.f32 %v1674, %v1786
      %v1870 = vadd.f32 %v1675, %v1789
      %v1871 = vadd.f32 %v1676, %v1792
      %v1872 = vadd.f32 %v1677, %v1795
      %v1873 = vadd.f32 %v1678, %v1798
      %v1874 = vadd.f32 %v1679, %v1801
      %v1875 = vadd.f32 %v1680, %v1804
      %v1876 = vadd.f32 %v1681, %v1807
      %v1877 = vadd.f32 %v1682, %v1810
      %v1878 = vadd.f32 %v1683, %v1813
      %v1879 = vadd.f32 %v1684, %v1816
      %v1880 = vadd.f32 %v1685, %v1819
      %v1881 = vadd.f32 %v1686, %v1822
      %v1882 = vadd.f32 %v1687, %v1825
      %v1883 = vadd.f32 %v1688, %v1828
      %v1884 = vadd.f32 %v1689, %v1831
      %v1885 = vadd.f32 %v1690, %v1834
      %v1886 = vadd.f32 %v1691, %v1837
      %v1887 = vadd.f32 %v1692, %v1840
      %v1888 = vadd.f32 %v1693, %v1843
      %v1889 = vadd.f32 %v1694, %v1846
      %v1890 = vadd.f32 %v1695, %v1849
      %v1891 = vadd.f32 %v1696, %v1852
      %v1892 = vadd.f32 %v1697, %v1855
      %v1893 = vadd.f32 %v1698, %v1858
      %v1894 = vadd.f32 %v1699, %v1861
      %v1895 = vld [vmem:[%s1700 + $0x1] sm:$0xff]
      %v1896 = vld [vmem:[%s1700 + $0x9] sm:$0xff]
      %v1897 = vld [vmem:[%s1700 + $0x19] sm:$0xff]
      %v1898 = vld [vmem:[%s1700 + $0x21] sm:$0xff]
      %v1899 = vld [vmem:[%s1700 + $0x31] sm:$0xff]
      %v1900 = vld [vmem:[%s1700 + $0x39] sm:$0xff]
      %v1901 = vld [vmem:[%s1700 + $0x49] sm:$0xff]
      %v1902 = vld [vmem:[%s1700 + $0x51] sm:$0xff]
      %v1903 = vld [vmem:[%s1700 + $0x61] sm:$0xff]
      %v1904 = vld [vmem:[%s1700 + $0x69] sm:$0xff]
      %v1905 = vld [vmem:[%s1700 + $0x79] sm:$0xff]
      %v1906 = vld [vmem:[%s1700 + $0x81] sm:$0xff]
      %v1907 = vld [vmem:[%s1700 + $0x91] sm:$0xff]
      %v1908 = vld [vmem:[%s1700 + $0x99] sm:$0xff]
      %v1909 = vld [vmem:[%s1700 + $0xa9] sm:$0xff]
      %v1910 = vld [vmem:[%s1700 + $0xb1] sm:$0xff]
      %v1911 = vld [vmem:[%s1700 + $0xc1] sm:$0xff]
      %v1912 = vld [vmem:[%s1700 + $0xc9] sm:$0xff]
      %v1913 = vld [vmem:[%s1700 + $0xd9] sm:$0xff]
      %v1914 = vld [vmem:[%s1700 + $0xe1] sm:$0xff]
      %v1915 = vld [vmem:[%s1700 + $0xf1] sm:$0xff]
      %v1916 = vld [vmem:[%s1700 + $0xf9] sm:$0xff]
      %v1917 = vld [vmem:[%s1700 + $0x109] sm:$0xff]
      %v1918 = vld [vmem:[%s1700 + $0x111] sm:$0xff]
      %v1919 = vld [vmem:[%s1700 + $0x121] sm:$0xff]
      %v1920 = vld [vmem:[%s1700 + $0x129] sm:$0xff]
      %v1921 = vld [vmem:[%s1700 + $0x139] sm:$0xff]
      %v1922 = vld [vmem:[%s1700 + $0x141] sm:$0xff]
      %v1923 = vld [vmem:[%s1700 + $0x151] sm:$0xff]
      %v1924 = vld [vmem:[%s1700 + $0x159] sm:$0xff]
      %v1925 = vld [vmem:[%s1700 + $0x169] sm:$0xff]
      %v1926 = vld [vmem:[%s1700 + $0x171] sm:$0xff]
      %s1927 = scalar_lea.vmem %s3, 896
      %v1928 = vld [vmem:[%s1927] sm:$0xff]
      %v1929 = vld [vmem:[%s1927 + $0x8] sm:$0xff]
      %v1930 = vld [vmem:[%s1927 + $0x10] sm:$0xff]
      %v1931 = vld [vmem:[%s1927 + $0x18] sm:$0xff]
      %v1932 = vld [vmem:[%s1927 + $0x20] sm:$0xff]
      %v1933 = vld [vmem:[%s1927 + $0x28] sm:$0xff]
      %v1934 = vld [vmem:[%s1927 + $0x30] sm:$0xff]
      %v1935 = vld [vmem:[%s1927 + $0x38] sm:$0xff]
      %v1936 = vld [vmem:[%s1927 + $0x40] sm:$0xff]
      %v1937 = vld [vmem:[%s1927 + $0x48] sm:$0xff]
      %v1938 = vld [vmem:[%s1927 + $0x50] sm:$0xff]
      %v1939 = vld [vmem:[%s1927 + $0x58] sm:$0xff]
      %v1940 = vld [vmem:[%s1927 + $0x60] sm:$0xff]
      %v1941 = vld [vmem:[%s1927 + $0x68] sm:$0xff]
      %v1942 = vld [vmem:[%s1927 + $0x70] sm:$0xff]
      %v1943 = vld [vmem:[%s1927 + $0x78] sm:$0xff]
      %1944 = vmatpush.msra.mxu0 %v1943
      %1945 = vmatpush.msra.mxu0 %v1942
      %1946 = vmatpush.msra.mxu0 %v1941
      %1947 = vmatpush.msra.mxu0 %v1940
      %1948 = vmatpush.msra.mxu0 %v1939
      %1949 = vmatpush.msra.mxu0 %v1938
      %1950 = vmatpush.msra.mxu0 %v1937
      %1951 = vmatpush.msra.mxu0 %v1936
      %1952 = vmatpush.msra.mxu0 %v1935
      %1953 = vmatpush.msra.mxu0 %v1934
      %1954 = vmatpush.msra.mxu0 %v1933
      %1955 = vmatpush.msra.mxu0 %v1932
      %1956 = vmatpush.msra.mxu0 %v1931
      %1957 = vmatpush.msra.mxu0 %v1930
      %1958 = vmatpush.msra.mxu0 %v1929
      %1959 = vmatpush.msra.mxu0 %v1928
      %1960 = vmatmul.f32.gmra.mxu0 %v1895
      %v1961 = vpop.f32.mrf.mxu0
      %v1962 = vadd.f32 0.0, %v1961
      %1963 = vmatmul.f32.gmra.mxu0 %v1896
      %v1964 = vpop.f32.mrf.mxu0
      %v1965 = vadd.f32 0.0, %v1964
      %1966 = vmatmul.f32.gmra.mxu0 %v1897
      %v1967 = vpop.f32.mrf.mxu0
      %v1968 = vadd.f32 0.0, %v1967
      %1969 = vmatmul.f32.gmra.mxu0 %v1898
      %v1970 = vpop.f32.mrf.mxu0
      %v1971 = vadd.f32 0.0, %v1970
      %1972 = vmatmul.f32.gmra.mxu0 %v1899
      %v1973 = vpop.f32.mrf.mxu0
      %v1974 = vadd.f32 0.0, %v1973
      %1975 = vmatmul.f32.gmra.mxu0 %v1900
      %v1976 = vpop.f32.mrf.mxu0
      %v1977 = vadd.f32 0.0, %v1976
      %1978 = vmatmul.f32.gmra.mxu0 %v1901
      %v1979 = vpop.f32.mrf.mxu0
      %v1980 = vadd.f32 0.0, %v1979
      %1981 = vmatmul.f32.gmra.mxu0 %v1902
      %v1982 = vpop.f32.mrf.mxu0
      %v1983 = vadd.f32 0.0, %v1982
      %1984 = vmatmul.f32.gmra.mxu0 %v1903
      %v1985 = vpop.f32.mrf.mxu0
      %v1986 = vadd.f32 0.0, %v1985
      %1987 = vmatmul.f32.gmra.mxu0 %v1904
      %v1988 = vpop.f32.mrf.mxu0
      %v1989 = vadd.f32 0.0, %v1988
      %1990 = vmatmul.f32.gmra.mxu0 %v1905
      %v1991 = vpop.f32.mrf.mxu0
      %v1992 = vadd.f32 0.0, %v1991
      %1993 = vmatmul.f32.gmra.mxu0 %v1906
      %v1994 = vpop.f32.mrf.mxu0
      %v1995 = vadd.f32 0.0, %v1994
      %1996 = vmatmul.f32.gmra.mxu0 %v1907
      %v1997 = vpop.f32.mrf.mxu0
      %v1998 = vadd.f32 0.0, %v1997
      %1999 = vmatmul.f32.gmra.mxu0 %v1908
      %v2000 = vpop.f32.mrf.mxu0
      %v2001 = vadd.f32 0.0, %v2000
      %2002 = vmatmul.f32.gmra.mxu0 %v1909
      %v2003 = vpop.f32.mrf.mxu0
      %v2004 = vadd.f32 0.0, %v2003
      %2005 = vmatmul.f32.gmra.mxu0 %v1910
      %v2006 = vpop.f32.mrf.mxu0
      %v2007 = vadd.f32 0.0, %v2006
      %2008 = vmatmul.f32.gmra.mxu0 %v1911
      %v2009 = vpop.f32.mrf.mxu0
      %v2010 = vadd.f32 0.0, %v2009
      %2011 = vmatmul.f32.gmra.mxu0 %v1912
      %v2012 = vpop.f32.mrf.mxu0
      %v2013 = vadd.f32 0.0, %v2012
      %2014 = vmatmul.f32.gmra.mxu0 %v1913
      %v2015 = vpop.f32.mrf.mxu0
      %v2016 = vadd.f32 0.0, %v2015
      %2017 = vmatmul.f32.gmra.mxu0 %v1914
      %v2018 = vpop.f32.mrf.mxu0
      %v2019 = vadd.f32 0.0, %v2018
      %2020 = vmatmul.f32.gmra.mxu0 %v1915
      %v2021 = vpop.f32.mrf.mxu0
      %v2022 = vadd.f32 0.0, %v2021
      %2023 = vmatmul.f32.gmra.mxu0 %v1916
      %v2024 = vpop.f32.mrf.mxu0
      %v2025 = vadd.f32 0.0, %v2024
      %2026 = vmatmul.f32.gmra.mxu0 %v1917
      %v2027 = vpop.f32.mrf.mxu0
      %v2028 = vadd.f32 0.0, %v2027
      %2029 = vmatmul.f32.gmra.mxu0 %v1918
      %v2030 = vpop.f32.mrf.mxu0
      %v2031 = vadd.f32 0.0, %v2030
      %2032 = vmatmul.f32.gmra.mxu0 %v1919
      %v2033 = vpop.f32.mrf.mxu0
      %v2034 = vadd.f32 0.0, %v2033
      %2035 = vmatmul.f32.gmra.mxu0 %v1920
      %v2036 = vpop.f32.mrf.mxu0
      %v2037 = vadd.f32 0.0, %v2036
      %2038 = vmatmul.f32.gmra.mxu0 %v1921
      %v2039 = vpop.f32.mrf.mxu0
      %v2040 = vadd.f32 0.0, %v2039
      %2041 = vmatmul.f32.gmra.mxu0 %v1922
      %v2042 = vpop.f32.mrf.mxu0
      %v2043 = vadd.f32 0.0, %v2042
      %2044 = vmatmul.f32.gmra.mxu0 %v1923
      %v2045 = vpop.f32.mrf.mxu0
      %v2046 = vadd.f32 0.0, %v2045
      %2047 = vmatmul.f32.gmra.mxu0 %v1924
      %v2048 = vpop.f32.mrf.mxu0
      %v2049 = vadd.f32 0.0, %v2048
      %2050 = vmatmul.f32.gmra.mxu0 %v1925
      %v2051 = vpop.f32.mrf.mxu0
      %v2052 = vadd.f32 0.0, %v2051
      %2053 = vmatmul.f32.gmra.mxu0 %v1926
      %v2054 = vpop.f32.mrf.mxu0
      %v2055 = vadd.f32 0.0, %v2054
      %2056 = vdwg.mxu0
      %v2057 = vadd.f32 %v1863, %v1962
      %v2058 = vadd.f32 %v1864, %v1965
      %v2059 = vadd.f32 %v1865, %v1968
      %v2060 = vadd.f32 %v1866, %v1971
      %v2061 = vadd.f32 %v1867, %v1974
      %v2062 = vadd.f32 %v1868, %v1977
      %v2063 = vadd.f32 %v1869, %v1980
      %v2064 = vadd.f32 %v1870, %v1983
      %v2065 = vadd.f32 %v1871, %v1986
      %v2066 = vadd.f32 %v1872, %v1989
      %v2067 = vadd.f32 %v1873, %v1992
      %v2068 = vadd.f32 %v1874, %v1995
      %v2069 = vadd.f32 %v1875, %v1998
      %v2070 = vadd.f32 %v1876, %v2001
      %v2071 = vadd.f32 %v1877, %v2004
      %v2072 = vadd.f32 %v1878, %v2007
      %v2073 = vadd.f32 %v1879, %v2010
      %v2074 = vadd.f32 %v1880, %v2013
      %v2075 = vadd.f32 %v1881, %v2016
      %v2076 = vadd.f32 %v1882, %v2019
      %v2077 = vadd.f32 %v1883, %v2022
      %v2078 = vadd.f32 %v1884, %v2025
      %v2079 = vadd.f32 %v1885, %v2028
      %v2080 = vadd.f32 %v1886, %v2031
      %v2081 = vadd.f32 %v1887, %v2034
      %v2082 = vadd.f32 %v1888, %v2037
      %v2083 = vadd.f32 %v1889, %v2040
      %v2084 = vadd.f32 %v1890, %v2043
      %v2085 = vadd.f32 %v1891, %v2046
      %v2086 = vadd.f32 %v1892, %v2049
      %v2087 = vadd.f32 %v1893, %v2052
      %v2088 = vadd.f32 %v1894, %v2055
      %v2089 = vld [vmem:[%s1700 + $0x2] sm:$0xff]
      %v2090 = vld [vmem:[%s1700 + $0xa] sm:$0xff]
      %v2091 = vld [vmem:[%s1700 + $0x1a] sm:$0xff]
      %v2092 = vld [vmem:[%s1700 + $0x22] sm:$0xff]
      %v2093 = vld [vmem:[%s1700 + $0x32] sm:$0xff]
      %v2094 = vld [vmem:[%s1700 + $0x3a] sm:$0xff]
      %v2095 = vld [vmem:[%s1700 + $0x4a] sm:$0xff]
      %v2096 = vld [vmem:[%s1700 + $0x52] sm:$0xff]
      %v2097 = vld [vmem:[%s1700 + $0x62] sm:$0xff]
      %v2098 = vld [vmem:[%s1700 + $0x6a] sm:$0xff]
      %v2099 = vld [vmem:[%s1700 + $0x7a] sm:$0xff]
      %v2100 = vld [vmem:[%s1700 + $0x82] sm:$0xff]
      %v2101 = vld [vmem:[%s1700 + $0x92] sm:$0xff]
      %v2102 = vld [vmem:[%s1700 + $0x9a] sm:$0xff]
      %v2103 = vld [vmem:[%s1700 + $0xaa] sm:$0xff]
      %v2104 = vld [vmem:[%s1700 + $0xb2] sm:$0xff]
      %v2105 = vld [vmem:[%s1700 + $0xc2] sm:$0xff]
      %v2106 = vld [vmem:[%s1700 + $0xca] sm:$0xff]
      %v2107 = vld [vmem:[%s1700 + $0xda] sm:$0xff]
      %v2108 = vld [vmem:[%s1700 + $0xe2] sm:$0xff]
      %v2109 = vld [vmem:[%s1700 + $0xf2] sm:$0xff]
      %v2110 = vld [vmem:[%s1700 + $0xfa] sm:$0xff]
      %v2111 = vld [vmem:[%s1700 + $0x10a] sm:$0xff]
      %v2112 = vld [vmem:[%s1700 + $0x112] sm:$0xff]
      %v2113 = vld [vmem:[%s1700 + $0x122] sm:$0xff]
      %v2114 = vld [vmem:[%s1700 + $0x12a] sm:$0xff]
      %v2115 = vld [vmem:[%s1700 + $0x13a] sm:$0xff]
      %v2116 = vld [vmem:[%s1700 + $0x142] sm:$0xff]
      %v2117 = vld [vmem:[%s1700 + $0x152] sm:$0xff]
      %v2118 = vld [vmem:[%s1700 + $0x15a] sm:$0xff]
      %v2119 = vld [vmem:[%s1700 + $0x16a] sm:$0xff]
      %v2120 = vld [vmem:[%s1700 + $0x172] sm:$0xff]
      %s2121 = scalar_lea.vmem %s3, 1024
      %v2122 = vld [vmem:[%s2121] sm:$0xff]
      %v2123 = vld [vmem:[%s2121 + $0x8] sm:$0xff]
      %v2124 = vld [vmem:[%s2121 + $0x10] sm:$0xff]
      %v2125 = vld [vmem:[%s2121 + $0x18] sm:$0xff]
      %v2126 = vld [vmem:[%s2121 + $0x20] sm:$0xff]
      %v2127 = vld [vmem:[%s2121 + $0x28] sm:$0xff]
      %v2128 = vld [vmem:[%s2121 + $0x30] sm:$0xff]
      %v2129 = vld [vmem:[%s2121 + $0x38] sm:$0xff]
      %v2130 = vld [vmem:[%s2121 + $0x40] sm:$0xff]
      %v2131 = vld [vmem:[%s2121 + $0x48] sm:$0xff]
      %v2132 = vld [vmem:[%s2121 + $0x50] sm:$0xff]
      %v2133 = vld [vmem:[%s2121 + $0x58] sm:$0xff]
      %v2134 = vld [vmem:[%s2121 + $0x60] sm:$0xff]
      %v2135 = vld [vmem:[%s2121 + $0x68] sm:$0xff]
      %v2136 = vld [vmem:[%s2121 + $0x70] sm:$0xff]
      %v2137 = vld [vmem:[%s2121 + $0x78] sm:$0xff]
      %2138 = vmatpush.msra.mxu0 %v2137
      %2139 = vmatpush.msra.mxu0 %v2136
      %2140 = vmatpush.msra.mxu0 %v2135
      %2141 = vmatpush.msra.mxu0 %v2134
      %2142 = vmatpush.msra.mxu0 %v2133
      %2143 = vmatpush.msra.mxu0 %v2132
      %2144 = vmatpush.msra.mxu0 %v2131
      %2145 = vmatpush.msra.mxu0 %v2130
      %2146 = vmatpush.msra.mxu0 %v2129
      %2147 = vmatpush.msra.mxu0 %v2128
      %2148 = vmatpush.msra.mxu0 %v2127
      %2149 = vmatpush.msra.mxu0 %v2126
      %2150 = vmatpush.msra.mxu0 %v2125
      %2151 = vmatpush.msra.mxu0 %v2124
      %2152 = vmatpush.msra.mxu0 %v2123
      %2153 = vmatpush.msra.mxu0 %v2122
      %2154 = vmatmul.f32.gmra.mxu0 %v2089
      %v2155 = vpop.f32.mrf.mxu0
      %v2156 = vadd.f32 0.0, %v2155
      %2157 = vmatmul.f32.gmra.mxu0 %v2090
      %v2158 = vpop.f32.mrf.mxu0
      %v2159 = vadd.f32 0.0, %v2158
      %2160 = vmatmul.f32.gmra.mxu0 %v2091
      %v2161 = vpop.f32.mrf.mxu0
      %v2162 = vadd.f32 0.0, %v2161
      %2163 = vmatmul.f32.gmra.mxu0 %v2092
      %v2164 = vpop.f32.mrf.mxu0
      %v2165 = vadd.f32 0.0, %v2164
      %2166 = vmatmul.f32.gmra.mxu0 %v2093
      %v2167 = vpop.f32.mrf.mxu0
      %v2168 = vadd.f32 0.0, %v2167
      %2169 = vmatmul.f32.gmra.mxu0 %v2094
      %v2170 = vpop.f32.mrf.mxu0
      %v2171 = vadd.f32 0.0, %v2170
      %2172 = vmatmul.f32.gmra.mxu0 %v2095
      %v2173 = vpop.f32.mrf.mxu0
      %v2174 = vadd.f32 0.0, %v2173
      %2175 = vmatmul.f32.gmra.mxu0 %v2096
      %v2176 = vpop.f32.mrf.mxu0
      %v2177 = vadd.f32 0.0, %v2176
      %2178 = vmatmul.f32.gmra.mxu0 %v2097
      %v2179 = vpop.f32.mrf.mxu0
      %v2180 = vadd.f32 0.0, %v2179
      %2181 = vmatmul.f32.gmra.mxu0 %v2098
      %v2182 = vpop.f32.mrf.mxu0
      %v2183 = vadd.f32 0.0, %v2182
      %2184 = vmatmul.f32.gmra.mxu0 %v2099
      %v2185 = vpop.f32.mrf.mxu0
      %v2186 = vadd.f32 0.0, %v2185
      %2187 = vmatmul.f32.gmra.mxu0 %v2100
      %v2188 = vpop.f32.mrf.mxu0
      %v2189 = vadd.f32 0.0, %v2188
      %2190 = vmatmul.f32.gmra.mxu0 %v2101
      %v2191 = vpop.f32.mrf.mxu0
      %v2192 = vadd.f32 0.0, %v2191
      %2193 = vmatmul.f32.gmra.mxu0 %v2102
      %v2194 = vpop.f32.mrf.mxu0
      %v2195 = vadd.f32 0.0, %v2194
      %2196 = vmatmul.f32.gmra.mxu0 %v2103
      %v2197 = vpop.f32.mrf.mxu0
      %v2198 = vadd.f32 0.0, %v2197
      %2199 = vmatmul.f32.gmra.mxu0 %v2104
      %v2200 = vpop.f32.mrf.mxu0
      %v2201 = vadd.f32 0.0, %v2200
      %2202 = vmatmul.f32.gmra.mxu0 %v2105
      %v2203 = vpop.f32.mrf.mxu0
      %v2204 = vadd.f32 0.0, %v2203
      %2205 = vmatmul.f32.gmra.mxu0 %v2106
      %v2206 = vpop.f32.mrf.mxu0
      %v2207 = vadd.f32 0.0, %v2206
      %2208 = vmatmul.f32.gmra.mxu0 %v2107
      %v2209 = vpop.f32.mrf.mxu0
      %v2210 = vadd.f32 0.0, %v2209
      %2211 = vmatmul.f32.gmra.mxu0 %v2108
      %v2212 = vpop.f32.mrf.mxu0
      %v2213 = vadd.f32 0.0, %v2212
      %2214 = vmatmul.f32.gmra.mxu0 %v2109
      %v2215 = vpop.f32.mrf.mxu0
      %v2216 = vadd.f32 0.0, %v2215
      %2217 = vmatmul.f32.gmra.mxu0 %v2110
      %v2218 = vpop.f32.mrf.mxu0
      %v2219 = vadd.f32 0.0, %v2218
      %2220 = vmatmul.f32.gmra.mxu0 %v2111
      %v2221 = vpop.f32.mrf.mxu0
      %v2222 = vadd.f32 0.0, %v2221
      %2223 = vmatmul.f32.gmra.mxu0 %v2112
      %v2224 = vpop.f32.mrf.mxu0
      %v2225 = vadd.f32 0.0, %v2224
      %2226 = vmatmul.f32.gmra.mxu0 %v2113
      %v2227 = vpop.f32.mrf.mxu0
      %v2228 = vadd.f32 0.0, %v2227
      %2229 = vmatmul.f32.gmra.mxu0 %v2114
      %v2230 = vpop.f32.mrf.mxu0
      %v2231 = vadd.f32 0.0, %v2230
      %2232 = vmatmul.f32.gmra.mxu0 %v2115
      %v2233 = vpop.f32.mrf.mxu0
      %v2234 = vadd.f32 0.0, %v2233
      %2235 = vmatmul.f32.gmra.mxu0 %v2116
      %v2236 = vpop.f32.mrf.mxu0
      %v2237 = vadd.f32 0.0, %v2236
      %2238 = vmatmul.f32.gmra.mxu0 %v2117
      %v2239 = vpop.f32.mrf.mxu0
      %v2240 = vadd.f32 0.0, %v2239
      %2241 = vmatmul.f32.gmra.mxu0 %v2118
      %v2242 = vpop.f32.mrf.mxu0
      %v2243 = vadd.f32 0.0, %v2242
      %2244 = vmatmul.f32.gmra.mxu0 %v2119
      %v2245 = vpop.f32.mrf.mxu0
      %v2246 = vadd.f32 0.0, %v2245
      %2247 = vmatmul.f32.gmra.mxu0 %v2120
      %v2248 = vpop.f32.mrf.mxu0
      %v2249 = vadd.f32 0.0, %v2248
      %2250 = vdwg.mxu0
      %v2251 = vadd.f32 %v2057, %v2156
      %v2252 = vadd.f32 %v2058, %v2159
      %v2253 = vadd.f32 %v2059, %v2162
      %v2254 = vadd.f32 %v2060, %v2165
      %v2255 = vadd.f32 %v2061, %v2168
      %v2256 = vadd.f32 %v2062, %v2171
      %v2257 = vadd.f32 %v2063, %v2174
      %v2258 = vadd.f32 %v2064, %v2177
      %v2259 = vadd.f32 %v2065, %v2180
      %v2260 = vadd.f32 %v2066, %v2183
      %v2261 = vadd.f32 %v2067, %v2186
      %v2262 = vadd.f32 %v2068, %v2189
      %v2263 = vadd.f32 %v2069, %v2192
      %v2264 = vadd.f32 %v2070, %v2195
      %v2265 = vadd.f32 %v2071, %v2198
      %v2266 = vadd.f32 %v2072, %v2201
      %v2267 = vadd.f32 %v2073, %v2204
      %v2268 = vadd.f32 %v2074, %v2207
      %v2269 = vadd.f32 %v2075, %v2210
      %v2270 = vadd.f32 %v2076, %v2213
      %v2271 = vadd.f32 %v2077, %v2216
      %v2272 = vadd.f32 %v2078, %v2219
      %v2273 = vadd.f32 %v2079, %v2222
      %v2274 = vadd.f32 %v2080, %v2225
      %v2275 = vadd.f32 %v2081, %v2228
      %v2276 = vadd.f32 %v2082, %v2231
      %v2277 = vadd.f32 %v2083, %v2234
      %v2278 = vadd.f32 %v2084, %v2237
      %v2279 = vadd.f32 %v2085, %v2240
      %v2280 = vadd.f32 %v2086, %v2243
      %v2281 = vadd.f32 %v2087, %v2246
      %v2282 = vadd.f32 %v2088, %v2249
      %v2283 = vld [vmem:[%s4] sm:$0x1]
      %v2285 = vperm.slane %v2283, 0
      %v2287 = vadd.f32 %v2251, %v2285
      %v2288 = vadd.f32 %v2252, %v2285
      %v2289 = vadd.f32 %v2253, %v2285
      %v2290 = vadd.f32 %v2254, %v2285
      %v2291 = vadd.f32 %v2255, %v2285
      %v2292 = vadd.f32 %v2256, %v2285
      %v2293 = vadd.f32 %v2257, %v2285
      %v2294 = vadd.f32 %v2258, %v2285
      %v2295 = vadd.f32 %v2259, %v2285
      %v2296 = vadd.f32 %v2260, %v2285
      %v2297 = vadd.f32 %v2261, %v2285
      %v2298 = vadd.f32 %v2262, %v2285
      %v2299 = vadd.f32 %v2263, %v2285
      %v2300 = vadd.f32 %v2264, %v2285
      %v2301 = vadd.f32 %v2265, %v2285
      %v2302 = vadd.f32 %v2266, %v2285
      %v2303 = vadd.f32 %v2267, %v2285
      %v2304 = vadd.f32 %v2268, %v2285
      %v2305 = vadd.f32 %v2269, %v2285
      %v2306 = vadd.f32 %v2270, %v2285
      %v2307 = vadd.f32 %v2271, %v2285
      %v2308 = vadd.f32 %v2272, %v2285
      %v2309 = vadd.f32 %v2273, %v2285
      %v2310 = vadd.f32 %v2274, %v2285
      %v2311 = vadd.f32 %v2275, %v2285
      %v2312 = vadd.f32 %v2276, %v2285
      %v2313 = vadd.f32 %v2277, %v2285
      %v2314 = vadd.f32 %v2278, %v2285
      %v2315 = vadd.f32 %v2279, %v2285
      %v2316 = vadd.f32 %v2280, %v2285
      %v2317 = vadd.f32 %v2281, %v2285
      %v2318 = vadd.f32 %v2282, %v2285
      %v2319 = vmax.f32 %v2287, 0.0
      %v2320 = vmax.f32 %v2288, 0.0
      %v2321 = vmax.f32 %v2289, 0.0
      %v2322 = vmax.f32 %v2290, 0.0
      %v2323 = vmax.f32 %v2291, 0.0
      %v2324 = vmax.f32 %v2292, 0.0
      %v2325 = vmax.f32 %v2293, 0.0
      %v2326 = vmax.f32 %v2294, 0.0
      %v2327 = vmax.f32 %v2295, 0.0
      %v2328 = vmax.f32 %v2296, 0.0
      %v2329 = vmax.f32 %v2297, 0.0
      %v2330 = vmax.f32 %v2298, 0.0
      %v2331 = vmax.f32 %v2299, 0.0
      %v2332 = vmax.f32 %v2300, 0.0
      %v2333 = vmax.f32 %v2301, 0.0
      %v2334 = vmax.f32 %v2302, 0.0
      %v2335 = vmax.f32 %v2303, 0.0
      %v2336 = vmax.f32 %v2304, 0.0
      %v2337 = vmax.f32 %v2305, 0.0
      %v2338 = vmax.f32 %v2306, 0.0
      %v2339 = vmax.f32 %v2307, 0.0
      %v2340 = vmax.f32 %v2308, 0.0
      %v2341 = vmax.f32 %v2309, 0.0
      %v2342 = vmax.f32 %v2310, 0.0
      %v2343 = vmax.f32 %v2311, 0.0
      %v2344 = vmax.f32 %v2312, 0.0
      %v2345 = vmax.f32 %v2313, 0.0
      %v2346 = vmax.f32 %v2314, 0.0
      %v2347 = vmax.f32 %v2315, 0.0
      %v2348 = vmax.f32 %v2316, 0.0
      %v2349 = vmax.f32 %v2317, 0.0
      %v2350 = vmax.f32 %v2318, 0.0
      %2351 = vst [vmem:[%s226] sm:$0xff] %v2319
      %2352 = vst [vmem:[%s226 + $0x8] sm:$0xff] %v2320
      %2353 = vst [vmem:[%s226 + $0x10] sm:$0xff] %v2321
      %2354 = vst [vmem:[%s226 + $0x18] sm:$0xff] %v2322
      %2355 = vst [vmem:[%s226 + $0x20] sm:$0xff] %v2323
      %2356 = vst [vmem:[%s226 + $0x28] sm:$0xff] %v2324
      %2357 = vst [vmem:[%s226 + $0x30] sm:$0xff] %v2325
      %2358 = vst [vmem:[%s226 + $0x38] sm:$0xff] %v2326
      %2359 = vst [vmem:[%s226 + $0x40] sm:$0xff] %v2327
      %2360 = vst [vmem:[%s226 + $0x48] sm:$0xff] %v2328
      %2361 = vst [vmem:[%s226 + $0x50] sm:$0xff] %v2329
      %2362 = vst [vmem:[%s226 + $0x58] sm:$0xff] %v2330
      %2363 = vst [vmem:[%s226 + $0x60] sm:$0xff] %v2331
      %2364 = vst [vmem:[%s226 + $0x68] sm:$0xff] %v2332
      %2365 = vst [vmem:[%s226 + $0x70] sm:$0xff] %v2333
      %2366 = vst [vmem:[%s226 + $0x78] sm:$0xff] %v2334
      %2367 = vst [vmem:[%s226 + $0x80] sm:$0xff] %v2335
      %2368 = vst [vmem:[%s226 + $0x88] sm:$0xff] %v2336
      %2369 = vst [vmem:[%s226 + $0x90] sm:$0xff] %v2337
      %2370 = vst [vmem:[%s226 + $0x98] sm:$0xff] %v2338
      %2371 = vst [vmem:[%s226 + $0xa0] sm:$0xff] %v2339
      %2372 = vst [vmem:[%s226 + $0xa8] sm:$0xff] %v2340
      %2373 = vst [vmem:[%s226 + $0xb0] sm:$0xff] %v2341
      %2374 = vst [vmem:[%s226 + $0xb8] sm:$0xff] %v2342
      %2375 = vst [vmem:[%s226 + $0xc0] sm:$0xff] %v2343
      %2376 = vst [vmem:[%s226 + $0xc8] sm:$0xff] %v2344
      %2377 = vst [vmem:[%s226 + $0xd0] sm:$0xff] %v2345
      %2378 = vst [vmem:[%s226 + $0xd8] sm:$0xff] %v2346
      %2379 = vst [vmem:[%s226 + $0xe0] sm:$0xff] %v2347
      %2380 = vst [vmem:[%s226 + $0xe8] sm:$0xff] %v2348
      %2381 = vst [vmem:[%s226 + $0xf0] sm:$0xff] %v2349
      %2382 = vst [vmem:[%s226 + $0xf8] sm:$0xff] %v2350
      %s2383 = smul.u32 32, %s16
      %p2384 = scmp.lt.s32.totalorder %s2383, 63
      %s2385 = scalar_select %p2384, %s2383, 63
      %s2386 = smul.addr %s2385, 8
      %s2387 = scalar_lea.vmem %s5, %s2386
      // Predicated region
      $region41: #{preparation_network.1} parent=39 // pred_check
        %p2388 = pneg %p144
      $region42: #{preparation_network.1} parent=39 // pred_check_branch
        %2390 = sbr.rel (%p2388) target = $region44
      $region43: #{preparation_network.1} parent=39 // pred_region
        %s2391 = smul.u32 32, %s16
      $region44: #{preparation_network.1} parent=39 // pred_fallthru
        _
    $region40: #{preparation_network.1} parent=5 // pred_fallthru
      _
    %p2392 = scmp.le.s32.totalorder 2, %s11
    // Predicated region
    $region45: #{preparation_network.1} parent=5 // pred_check
      %p2393 = pneg %p2392
    $region46: #{preparation_network.1} parent=5 // pred_check_branch
      %2395 = sbr.rel (%p2393) target = $region48
    $region47: #{preparation_network.1} parent=5 // pred_region
      %s2396 = ssub.s32 %s11, 2
      // Predicated region
      $region49: #{preparation_network.1} parent=47 // pred_check
        %p2397 = pneg %p150
      $region50: #{preparation_network.1} parent=47 // pred_check_branch
        %2399 = sbr.rel (%p2397) target = $region52
      $region51: #{preparation_network.1} parent=47 // pred_region
        %s2400 = smul.u32 32, %s17
        %p2401 = scmp.lt.s32.totalorder %s2400, 63
        %s2402 = scalar_select %p2401, %s2400, 63
        %s2403 = smul.addr %s2402, 8
        %s2404 = scalar_lea.vmem %s5, %s2403
      $region52: #{preparation_network.1} parent=47 // pred_fallthru
        _
    $region48: #{preparation_network.1} parent=5 // pred_fallthru
      _
  $region6: #{preparation_network.1} parent=0 // loop_footer
    %s15 = sadd.s32 1, %s11
  $region7: #{preparation_network.1} parent=0 // loop_footer_branch
    %10 = sbr.rel target = $region3
  $region8: #{preparation_network.1} parent=0 // loop_exit
    _

</llo_original>
